<compile_context>
chip_gen: v5e
topology: v5e:2x2
jax: 0.10.0
libtpu: 0.0.40
codegen_flags: <defaults>
</compile_context>

<pallas_src>
import numpy as np
import jax
import jax.numpy as jnp
from jax import lax
from jax.experimental import pallas as pl
from jax.experimental.pallas import tpu as pltpu


# ----------------------------------------------------------------------------
# Fused Pallas kernel: LSTM recurrence + tanh + line (streamed) + line2 + log_softmax
# ----------------------------------------------------------------------------
def fused_lstm_head_kernel(x_ref, wih_ref, whh_ref, b_ref,
                           w1_ref, b1_ref, w2_ref, b2_ref,
                           out_ref):
    """
    x_ref   : [Bb, T, D]  f32   BERT sequence output (batch block)
    wih_ref : [D, 4H]     bf16  W_ih^T
    whh_ref : [H, 4H]     bf16  W_hh^T
    b_ref   : [1, 4H]     f32   b_ih + b_hh
    w1_ref  : [T*H, M]    bf16  line.weight^T
    b1_ref  : [1, M]      f32
    w2_ref  : [M, C]      f32   line2.weight^T
    b2_ref  : [1, C]      f32
    out_ref : [Bb, C]     f32   log-probabilities
    """
    Bb, T, D = x_ref.shape
    H = whh_ref.shape[0]
    M = w1_ref.shape[1]

    # ---- hoisted input projection: one big MXU matmul + merged bias ----------
    x_flat = x_ref[...].reshape(Bb * T, D).astype(jnp.bfloat16)
    xw = jnp.dot(x_flat, wih_ref[...],
                 preferred_element_type=jnp.float32) + b_ref[...]   # [Bb*T, 4H]
    xw = xw.reshape(Bb, T, 4 * H)

    whh = whh_ref[...]                                              # bf16 [H,4H]

    h = jnp.zeros((Bb, H), jnp.float32)
    c = jnp.zeros((Bb, H), jnp.float32)
    o1 = jnp.zeros((Bb, M), jnp.float32)      # streamed `line` accumulator

    # ---- recurrence (fully unrolled; T is static & small here) ---------------
    for t in range(T):
        gates = xw[:, t, :] + jnp.dot(h.astype(jnp.bfloat16), whh,
                                      preferred_element_type=jnp.float32)  # [Bb,4H]
        # Activations on the full 4H-lane vreg (EUP slot), slice only for combine.
        sig = jax.nn.sigmoid(gates)
        tnh = jnp.tanh(gates)
        i_g = sig[:, 0 * H:1 * H]
        f_g = sig[:, 1 * H:2 * H]
        g_g = tnh[:, 2 * H:3 * H]
        o_g = sig[:, 3 * H:4 * H]
        c = f_g * c + i_g * g_g
        h = o_g * jnp.tanh(c)
        # Streamed classification head: this timestep's contribution to `line`.
        # tanh is elementwise => equals line(tanh(output.view(B,-1))) of PyTorch.
        o1 = o1 + jnp.dot(jnp.tanh(h).astype(jnp.bfloat16),
                          w1_ref[t * H:(t + 1) * H, :],
                          preferred_element_type=jnp.float32)       # [Bb, M]

    # ---- tiny epilogue: line2 + log_softmax ----------------------------------
    o1 = o1 + b1_ref[...]
    o2 = jnp.dot(o1, w2_ref[...],
                 preferred_element_type=jnp.float32) + b2_ref[...]  # [Bb, C]
    m = jnp.max(o2, axis=1, keepdims=True)
    lse = m + jnp.log(jnp.sum(jnp.exp(o2 - m), axis=1, keepdims=True))
    out_ref[...] = o2 - lse


# ----------------------------------------------------------------------------
# Wrapper
# ----------------------------------------------------------------------------
def bert_classifier_forward(doc_tok, kp):
    """Forward pass downstream of the (external) BERT encoder.

    doc_tok : [B, T, D] f32   BERT sequence output
    kp      : prepared (pre-transposed / pre-cast) parameter dict
    """
    B, T, D = doc_tok.shape
    H = kp["w_hh"].shape[0]
    M = kp["w1"].shape[1]
    C = kp["w2"].shape[1]

    bb = B                      # batch block; halve for real KoBERT shapes on v7x
    grid = (B // bb,)

    return pl.pallas_call(
        fused_lstm_head_kernel,
        out_shape=jax.ShapeDtypeStruct((B, C), jnp.float32),
        grid_spec=pltpu.PrefetchScalarGridSpec(
            num_scalar_prefetch=0,
            grid=grid,
            in_specs=[
                pl.BlockSpec((bb, T, D), lambda i: (i, 0, 0)),    # x (batch-major)
                pl.BlockSpec((D, 4 * H), lambda i: (0, 0)),       # W_ih^T
                pl.BlockSpec((H, 4 * H), lambda i: (0, 0)),       # W_hh^T
                pl.BlockSpec((1, 4 * H), lambda i: (0, 0)),       # merged bias
                pl.BlockSpec((T * H, M), lambda i: (0, 0)),       # W1^T
                pl.BlockSpec((1, M), lambda i: (0, 0)),           # b1
                pl.BlockSpec((M, C), lambda i: (0, 0)),           # W2^T
                pl.BlockSpec((1, C), lambda i: (0, 0)),           # b2
            ],
            out_specs=pl.BlockSpec((bb, C), lambda i: (i, 0)),
        ),
        compiler_params=pltpu.CompilerParams(
            dimension_semantics=("parallel",)),   # shards batch across TCs on v7x
    )(doc_tok, kp["w_ih"], kp["w_hh"], kp["b"],
      kp["w1"], kp["b1"], kp["w2"], kp["b2"])


def gen_attention_mask(token_ids, valid_length):
    # Equivalent of BERTClassifier.gen_attention_mask (consumed by the external
    # BERT encoder, which is stubbed here).
    pos = jnp.arange(token_ids.shape[1])[None, :]
    return (pos < valid_length[:, None]).astype(jnp.float32)


# ----------------------------------------------------------------------------
# Parameter init (PyTorch layout) + one-time preparation for the kernel
# ----------------------------------------------------------------------------
def init_params(key, input_size, hidden, max_len, num_classes):
    ks = jax.random.split(key, 8)
    s_l = 1.0 / np.sqrt(hidden)
    s_1 = 1.0 / np.sqrt(max_len * hidden)
    s_2 = 1.0 / np.sqrt(hidden)
    return {
        "w_ih": jax.random.uniform(ks[0], (4 * hidden, input_size), jnp.float32, -s_l, s_l),
        "w_hh": jax.random.uniform(ks[1], (4 * hidden, hidden), jnp.float32, -s_l, s_l),
        "b_ih": jax.random.uniform(ks[2], (4 * hidden,), jnp.float32, -s_l, s_l),
        "b_hh": jax.random.uniform(ks[3], (4 * hidden,), jnp.float32, -s_l, s_l),
        "w1":   jax.random.uniform(ks[4], (hidden, max_len * hidden), jnp.float32, -s_1, s_1),
        "b1":   jax.random.uniform(ks[5], (hidden,), jnp.float32, -s_1, s_1),
        "w2":   jax.random.uniform(ks[6], (num_classes, hidden), jnp.float32, -s_2, s_2),
        "b2":   jax.random.uniform(ks[7], (num_classes,), jnp.float32, -s_2, s_2),
    }


def prepare_params(p):
    """One-time layout prep: transpose / combine biases / cast MXU operands to bf16."""
    return {
        "w_ih": jnp.asarray(p["w_ih"].T, jnp.bfloat16),                # [D, 4H]
        "w_hh": jnp.asarray(p["w_hh"].T, jnp.bfloat16),                # [H, 4H]
        "b":    (p["b_ih"] + p["b_hh"]).reshape(1, -1).astype(jnp.float32),
        "w1":   jnp.asarray(p["w1"].T, jnp.bfloat16),                  # [T*H, M]
        "b1":   p["b1"].reshape(1, -1).astype(jnp.float32),
        "w2":   jnp.asarray(p["w2"].T, jnp.float32),                   # [M, C]
        "b2":   p["b2"].reshape(1, -1).astype(jnp.float32),
    }


# ----------------------------------------------------------------------------
# Pure-JAX f32 reference for verification
# ----------------------------------------------------------------------------
def reference_forward(doc_tok, p):
    B = doc_tok.shape[0]
    H = p["w_hh"].shape[1]

    def step(carry, x_t):
        h, c = carry
        gates = x_t @ p["w_ih"].T + p["b_ih"] + h @ p["w_hh"].T + p["b_hh"]
        i, f, g, o = jnp.split(gates, 4, axis=1)
        c = jax.nn.sigmoid(f) * c + jax.nn.sigmoid(i) * jnp.tanh(g)
        h = jax.nn.sigmoid(o) * jnp.tanh(c)
        return (h, c), h

    init = (jnp.zeros((B, H), jnp.float32), jnp.zeros((B, H), jnp.float32))
    _, hs = lax.scan(step, init, jnp.transpose(doc_tok, (1, 0, 2)))
    flat = jnp.transpose(hs, (1, 0, 2)).reshape(B, -1)
    z = jnp.tanh(flat)
    o1 = z @ p["w1"].T + p["b1"]
    o2 = o1 @ p["w2"].T + p["b2"]
    return jax.nn.log_softmax(o2, axis=1)


# ----------------------------------------------------------------------------
if __name__ == "__main__":
    # Small shapes consistent with the module (768->128, max_len 300->8).
    B, MAX_LEN, BERT_HIDDEN, LSTM_HIDDEN, NUM_CLASSES = 2, 8, 128, 32, 2

    key = jax.random.PRNGKey(0)
    k_tok, k_ids, k_par = jax.random.split(key, 3)

    # Stand-in for self.bert(...)[0] (sequence output).
    doc_tok = jax.random.normal(k_tok, (B, MAX_LEN, BERT_HIDDEN), jnp.float32)
    token_ids = jax.random.randint(k_ids, (B, MAX_LEN), 0, 1000)
    valid_length = jnp.array([5, 8], jnp.int32)
    _ = gen_attention_mask(token_ids, valid_length)   # fed to the (stubbed) BERT

    params = init_params(k_par, BERT_HIDDEN, LSTM_HIDDEN, MAX_LEN, NUM_CLASSES)
    kparams = prepare_params(params)                  # done once, outside forward

    fwd = jax.jit(bert_classifier_forward)
    out = fwd(doc_tok, kparams)
    out = jax.block_until_ready(out)

    ref = reference_forward(doc_tok, params)
    assert out.shape == (B, NUM_CLASSES), out.shape
    # bf16 MXU operands with f32 accumulation => bf16-level tolerance vs f32 ref.
    np.testing.assert_allclose(np.asarray(out), np.asarray(ref),
                               rtol=2e-2, atol=2e-2)
    print("KERNEL_OK")
</pallas_src>

<mosaic_0001>
module attributes {stable_mosaic.version = 11 : i64} {
  func.func @fused_lstm_head_kernel(%arg0: i32, %arg1: memref<2x8x128xf32, #tpu.memory_space<vmem>>, %arg2: memref<128x128xbf16, #tpu.memory_space<vmem>>, %arg3: memref<32x128xbf16, #tpu.memory_space<vmem>>, %arg4: memref<1x128xf32, #tpu.memory_space<vmem>>, %arg5: memref<256x32xbf16, #tpu.memory_space<vmem>>, %arg6: memref<1x32xf32, #tpu.memory_space<vmem>>, %arg7: memref<32x2xf32, #tpu.memory_space<vmem>>, %arg8: memref<1x2xf32, #tpu.memory_space<vmem>>, %arg9: memref<2x2xf32, #tpu.memory_space<vmem>>) attributes {dimension_semantics = [#tpu.dimension_semantics<parallel>], iteration_bounds = array<i64: 1>, scalar_prefetch = 0 : i64, scratch_operands = 0 : i64, tpu.core_type = #tpu.core_type<tc>, window_params = [{transform_indices = @transform_0, window_bounds = array<i64: 2, 8, 128>}, {pipeline_mode = #tpu.pipeline_mode<synchronous>, transform_indices = @transform_1, window_bounds = array<i64: 128, 128>}, {pipeline_mode = #tpu.pipeline_mode<synchronous>, transform_indices = @transform_2, window_bounds = array<i64: 32, 128>}, {pipeline_mode = #tpu.pipeline_mode<synchronous>, transform_indices = @transform_3, window_bounds = array<i64: 1, 128>}, {pipeline_mode = #tpu.pipeline_mode<synchronous>, transform_indices = @transform_4, window_bounds = array<i64: 256, 32>}, {pipeline_mode = #tpu.pipeline_mode<synchronous>, transform_indices = @transform_5, window_bounds = array<i64: 1, 32>}, {pipeline_mode = #tpu.pipeline_mode<synchronous>, transform_indices = @transform_6, window_bounds = array<i64: 32, 2>}, {pipeline_mode = #tpu.pipeline_mode<synchronous>, transform_indices = @transform_7, window_bounds = array<i64: 1, 2>}, {transform_indices = @transform_8, window_bounds = array<i64: 2, 2>}]} {
    %c0 = arith.constant 0 : index
    %c0_0 = arith.constant 0 : index
    %c0_1 = arith.constant 0 : index
    %0 = vector.load %arg1[%c0, %c0_0, %c0_1] : memref<2x8x128xf32, #tpu.memory_space<vmem>>, vector<2x8x128xf32>
    %1 = vector.shape_cast %0 : vector<2x8x128xf32> to vector<16x128xf32>
    %2 = arith.truncf %1 : vector<16x128xf32> to vector<16x128xbf16>
    %c0_2 = arith.constant 0 : index
    %c0_3 = arith.constant 0 : index
    %3 = vector.load %arg2[%c0_2, %c0_3] : memref<128x128xbf16, #tpu.memory_space<vmem>>, vector<128x128xbf16>
    %cst = arith.constant dense<0.000000e+00> : vector<16x128xf32>
    %4 = tpu.matmul %2, %3, %cst {dimension_numbers = #tpu.dot_dimension_numbers<[1], [0], [0], [1], [0, 0, 1, 1], [], []>} : vector<16x128xbf16>, vector<128x128xbf16>, vector<16x128xf32> -> vector<16x128xf32>
    %c0_4 = arith.constant 0 : index
    %c0_5 = arith.constant 0 : index
    %5 = vector.load %arg4[%c0_4, %c0_5] : memref<1x128xf32, #tpu.memory_space<vmem>>, vector<1x128xf32>
    %6 = vector.broadcast %5 : vector<1x128xf32> to vector<16x128xf32>
    %7 = arith.addf %4, %6 : vector<16x128xf32>
    %8 = vector.shape_cast %7 : vector<16x128xf32> to vector<2x8x128xf32>
    %c0_6 = arith.constant 0 : index
    %c0_7 = arith.constant 0 : index
    %9 = vector.load %arg3[%c0_6, %c0_7] : memref<32x128xbf16, #tpu.memory_space<vmem>>, vector<32x128xbf16>
    %cst_8 = arith.constant 0.000000e+00 : f32
    %10 = vector.broadcast %cst_8 : f32 to vector<2x32xf32>
    %cst_9 = arith.constant 0.000000e+00 : f32
    %11 = vector.broadcast %cst_9 : f32 to vector<2x32xf32>
    %cst_10 = arith.constant 0.000000e+00 : f32
    %12 = vector.broadcast %cst_10 : f32 to vector<2x32xf32>
    %13 = vector.extract_strided_slice %8 {offsets = [0, 0, 0], sizes = [2, 1, 128], strides = [1, 1, 1]} : vector<2x8x128xf32> to vector<2x1x128xf32>
    %14 = vector.shape_cast %13 : vector<2x1x128xf32> to vector<2x128xf32>
    %15 = arith.truncf %10 : vector<2x32xf32> to vector<2x32xbf16>
    %cst_11 = arith.constant dense<0.000000e+00> : vector<2x128xf32>
    %16 = tpu.matmul %15, %9, %cst_11 {dimension_numbers = #tpu.dot_dimension_numbers<[1], [0], [0], [1], [0, 0, 1, 1], [], []>} : vector<2x32xbf16>, vector<32x128xbf16>, vector<2x128xf32> -> vector<2x128xf32>
    %17 = arith.addf %14, %16 : vector<2x128xf32>
    %18 = arith.negf %17 : vector<2x128xf32>
    %19 = math.exp %18 : vector<2x128xf32>
    %cst_12 = arith.constant 1.000000e+00 : f32
    %20 = vector.broadcast %cst_12 : f32 to vector<2x128xf32>
    %21 = arith.addf %20, %19 : vector<2x128xf32>
    %22 = arith.divf %20, %21 : vector<2x128xf32>
    %23 = math.tanh %17 : vector<2x128xf32>
    %24 = vector.extract_strided_slice %22 {offsets = [0, 0], sizes = [2, 32], strides = [1, 1]} : vector<2x128xf32> to vector<2x32xf32>
    %25 = vector.extract_strided_slice %22 {offsets = [0, 32], sizes = [2, 32], strides = [1, 1]} : vector<2x128xf32> to vector<2x32xf32>
    %26 = vector.extract_strided_slice %23 {offsets = [0, 64], sizes = [2, 32], strides = [1, 1]} : vector<2x128xf32> to vector<2x32xf32>
    %27 = vector.extract_strided_slice %22 {offsets = [0, 96], sizes = [2, 32], strides = [1, 1]} : vector<2x128xf32> to vector<2x32xf32>
    %28 = arith.mulf %25, %11 : vector<2x32xf32>
    %29 = arith.mulf %24, %26 : vector<2x32xf32>
    %30 = arith.addf %28, %29 : vector<2x32xf32>
    %31 = math.tanh %30 : vector<2x32xf32>
    %32 = arith.mulf %27, %31 : vector<2x32xf32>
    %33 = math.tanh %32 : vector<2x32xf32>
    %34 = arith.truncf %33 : vector<2x32xf32> to vector<2x32xbf16>
    %c0_13 = arith.constant 0 : index
    %c0_14 = arith.constant 0 : index
    %35 = vector.load %arg5[%c0_13, %c0_14] : memref<256x32xbf16, #tpu.memory_space<vmem>>, vector<32x32xbf16>
    %cst_15 = arith.constant dense<0.000000e+00> : vector<2x32xf32>
    %36 = tpu.matmul %34, %35, %cst_15 {dimension_numbers = #tpu.dot_dimension_numbers<[1], [0], [0], [1], [0, 0, 1, 1], [], []>} : vector<2x32xbf16>, vector<32x32xbf16>, vector<2x32xf32> -> vector<2x32xf32>
    %37 = arith.addf %12, %36 : vector<2x32xf32>
    %38 = vector.extract_strided_slice %8 {offsets = [0, 1, 0], sizes = [2, 1, 128], strides = [1, 1, 1]} : vector<2x8x128xf32> to vector<2x1x128xf32>
    %39 = vector.shape_cast %38 : vector<2x1x128xf32> to vector<2x128xf32>
    %40 = arith.truncf %32 : vector<2x32xf32> to vector<2x32xbf16>
    %cst_16 = arith.constant dense<0.000000e+00> : vector<2x128xf32>
    %41 = tpu.matmul %40, %9, %cst_16 {dimension_numbers = #tpu.dot_dimension_numbers<[1], [0], [0], [1], [0, 0, 1, 1], [], []>} : vector<2x32xbf16>, vector<32x128xbf16>, vector<2x128xf32> -> vector<2x128xf32>
    %42 = arith.addf %39, %41 : vector<2x128xf32>
    %43 = arith.negf %42 : vector<2x128xf32>
    %44 = math.exp %43 : vector<2x128xf32>
    %cst_17 = arith.constant 1.000000e+00 : f32
    %45 = vector.broadcast %cst_17 : f32 to vector<2x128xf32>
    %46 = arith.addf %45, %44 : vector<2x128xf32>
    %47 = arith.divf %45, %46 : vector<2x128xf32>
    %48 = math.tanh %42 : vector<2x128xf32>
    %49 = vector.extract_strided_slice %47 {offsets = [0, 0], sizes = [2, 32], strides = [1, 1]} : vector<2x128xf32> to vector<2x32xf32>
    %50 = vector.extract_strided_slice %47 {offsets = [0, 32], sizes = [2, 32], strides = [1, 1]} : vector<2x128xf32> to vector<2x32xf32>
    %51 = vector.extract_strided_slice %48 {offsets = [0, 64], sizes = [2, 32], strides = [1, 1]} : vector<2x128xf32> to vector<2x32xf32>
    %52 = vector.extract_strided_slice %47 {offsets = [0, 96], sizes = [2, 32], strides = [1, 1]} : vector<2x128xf32> to vector<2x32xf32>
    %53 = arith.mulf %50, %30 : vector<2x32xf32>
    %54 = arith.mulf %49, %51 : vector<2x32xf32>
    %55 = arith.addf %53, %54 : vector<2x32xf32>
    %56 = math.tanh %55 : vector<2x32xf32>
    %57 = arith.mulf %52, %56 : vector<2x32xf32>
    %58 = math.tanh %57 : vector<2x32xf32>
    %59 = arith.truncf %58 : vector<2x32xf32> to vector<2x32xbf16>
    %c32 = arith.constant 32 : index
    %c0_18 = arith.constant 0 : index
    %60 = vector.load %arg5[%c32, %c0_18] : memref<256x32xbf16, #tpu.memory_space<vmem>>, vector<32x32xbf16>
    %cst_19 = arith.constant dense<0.000000e+00> : vector<2x32xf32>
    %61 = tpu.matmul %59, %60, %cst_19 {dimension_numbers = #tpu.dot_dimension_numbers<[1], [0], [0], [1], [0, 0, 1, 1], [], []>} : vector<2x32xbf16>, vector<32x32xbf16>, vector<2x32xf32> -> vector<2x32xf32>
    %62 = arith.addf %37, %61 : vector<2x32xf32>
    %63 = vector.extract_strided_slice %8 {offsets = [0, 2, 0], sizes = [2, 1, 128], strides = [1, 1, 1]} : vector<2x8x128xf32> to vector<2x1x128xf32>
    %64 = vector.shape_cast %63 : vector<2x1x128xf32> to vector<2x128xf32>
    %65 = arith.truncf %57 : vector<2x32xf32> to vector<2x32xbf16>
    %cst_20 = arith.constant dense<0.000000e+00> : vector<2x128xf32>
    %66 = tpu.matmul %65, %9, %cst_20 {dimension_numbers = #tpu.dot_dimension_numbers<[1], [0], [0], [1], [0, 0, 1, 1], [], []>} : vector<2x32xbf16>, vector<32x128xbf16>, vector<2x128xf32> -> vector<2x128xf32>
    %67 = arith.addf %64, %66 : vector<2x128xf32>
    %68 = arith.negf %67 : vector<2x128xf32>
    %69 = math.exp %68 : vector<2x128xf32>
    %cst_21 = arith.constant 1.000000e+00 : f32
    %70 = vector.broadcast %cst_21 : f32 to vector<2x128xf32>
    %71 = arith.addf %70, %69 : vector<2x128xf32>
    %72 = arith.divf %70, %71 : vector<2x128xf32>
    %73 = math.tanh %67 : vector<2x128xf32>
    %74 = vector.extract_strided_slice %72 {offsets = [0, 0], sizes = [2, 32], strides = [1, 1]} : vector<2x128xf32> to vector<2x32xf32>
    %75 = vector.extract_strided_slice %72 {offsets = [0, 32], sizes = [2, 32], strides = [1, 1]} : vector<2x128xf32> to vector<2x32xf32>
    %76 = vector.extract_strided_slice %73 {offsets = [0, 64], sizes = [2, 32], strides = [1, 1]} : vector<2x128xf32> to vector<2x32xf32>
    %77 = vector.extract_strided_slice %72 {offsets = [0, 96], sizes = [2, 32], strides = [1, 1]} : vector<2x128xf32> to vector<2x32xf32>
    %78 = arith.mulf %75, %55 : vector<2x32xf32>
    %79 = arith.mulf %74, %76 : vector<2x32xf32>
    %80 = arith.addf %78, %79 : vector<2x32xf32>
    %81 = math.tanh %80 : vector<2x32xf32>
    %82 = arith.mulf %77, %81 : vector<2x32xf32>
    %83 = math.tanh %82 : vector<2x32xf32>
    %84 = arith.truncf %83 : vector<2x32xf32> to vector<2x32xbf16>
    %c64 = arith.constant 64 : index
    %c0_22 = arith.constant 0 : index
    %85 = vector.load %arg5[%c64, %c0_22] : memref<256x32xbf16, #tpu.memory_space<vmem>>, vector<32x32xbf16>
    %cst_23 = arith.constant dense<0.000000e+00> : vector<2x32xf32>
    %86 = tpu.matmul %84, %85, %cst_23 {dimension_numbers = #tpu.dot_dimension_numbers<[1], [0], [0], [1], [0, 0, 1, 1], [], []>} : vector<2x32xbf16>, vector<32x32xbf16>, vector<2x32xf32> -> vector<2x32xf32>
    %87 = arith.addf %62, %86 : vector<2x32xf32>
    %88 = vector.extract_strided_slice %8 {offsets = [0, 3, 0], sizes = [2, 1, 128], strides = [1, 1, 1]} : vector<2x8x128xf32> to vector<2x1x128xf32>
    %89 = vector.shape_cast %88 : vector<2x1x128xf32> to vector<2x128xf32>
    %90 = arith.truncf %82 : vector<2x32xf32> to vector<2x32xbf16>
    %cst_24 = arith.constant dense<0.000000e+00> : vector<2x128xf32>
    %91 = tpu.matmul %90, %9, %cst_24 {dimension_numbers = #tpu.dot_dimension_numbers<[1], [0], [0], [1], [0, 0, 1, 1], [], []>} : vector<2x32xbf16>, vector<32x128xbf16>, vector<2x128xf32> -> vector<2x128xf32>
    %92 = arith.addf %89, %91 : vector<2x128xf32>
    %93 = arith.negf %92 : vector<2x128xf32>
    %94 = math.exp %93 : vector<2x128xf32>
    %cst_25 = arith.constant 1.000000e+00 : f32
    %95 = vector.broadcast %cst_25 : f32 to vector<2x128xf32>
    %96 = arith.addf %95, %94 : vector<2x128xf32>
    %97 = arith.divf %95, %96 : vector<2x128xf32>
    %98 = math.tanh %92 : vector<2x128xf32>
    %99 = vector.extract_strided_slice %97 {offsets = [0, 0], sizes = [2, 32], strides = [1, 1]} : vector<2x128xf32> to vector<2x32xf32>
    %100 = vector.extract_strided_slice %97 {offsets = [0, 32], sizes = [2, 32], strides = [1, 1]} : vector<2x128xf32> to vector<2x32xf32>
    %101 = vector.extract_strided_slice %98 {offsets = [0, 64], sizes = [2, 32], strides = [1, 1]} : vector<2x128xf32> to vector<2x32xf32>
    %102 = vector.extract_strided_slice %97 {offsets = [0, 96], sizes = [2, 32], strides = [1, 1]} : vector<2x128xf32> to vector<2x32xf32>
    %103 = arith.mulf %100, %80 : vector<2x32xf32>
    %104 = arith.mulf %99, %101 : vector<2x32xf32>
    %105 = arith.addf %103, %104 : vector<2x32xf32>
    %106 = math.tanh %105 : vector<2x32xf32>
    %107 = arith.mulf %102, %106 : vector<2x32xf32>
    %108 = math.tanh %107 : vector<2x32xf32>
    %109 = arith.truncf %108 : vector<2x32xf32> to vector<2x32xbf16>
    %c96 = arith.constant 96 : index
    %c0_26 = arith.constant 0 : index
    %110 = vector.load %arg5[%c96, %c0_26] : memref<256x32xbf16, #tpu.memory_space<vmem>>, vector<32x32xbf16>
    %cst_27 = arith.constant dense<0.000000e+00> : vector<2x32xf32>
    %111 = tpu.matmul %109, %110, %cst_27 {dimension_numbers = #tpu.dot_dimension_numbers<[1], [0], [0], [1], [0, 0, 1, 1], [], []>} : vector<2x32xbf16>, vector<32x32xbf16>, vector<2x32xf32> -> vector<2x32xf32>
    %112 = arith.addf %87, %111 : vector<2x32xf32>
    %113 = vector.extract_strided_slice %8 {offsets = [0, 4, 0], sizes = [2, 1, 128], strides = [1, 1, 1]} : vector<2x8x128xf32> to vector<2x1x128xf32>
    %114 = vector.shape_cast %113 : vector<2x1x128xf32> to vector<2x128xf32>
    %115 = arith.truncf %107 : vector<2x32xf32> to vector<2x32xbf16>
    %cst_28 = arith.constant dense<0.000000e+00> : vector<2x128xf32>
    %116 = tpu.matmul %115, %9, %cst_28 {dimension_numbers = #tpu.dot_dimension_numbers<[1], [0], [0], [1], [0, 0, 1, 1], [], []>} : vector<2x32xbf16>, vector<32x128xbf16>, vector<2x128xf32> -> vector<2x128xf32>
    %117 = arith.addf %114, %116 : vector<2x128xf32>
    %118 = arith.negf %117 : vector<2x128xf32>
    %119 = math.exp %118 : vector<2x128xf32>
    %cst_29 = arith.constant 1.000000e+00 : f32
    %120 = vector.broadcast %cst_29 : f32 to vector<2x128xf32>
    %121 = arith.addf %120, %119 : vector<2x128xf32>
    %122 = arith.divf %120, %121 : vector<2x128xf32>
    %123 = math.tanh %117 : vector<2x128xf32>
    %124 = vector.extract_strided_slice %122 {offsets = [0, 0], sizes = [2, 32], strides = [1, 1]} : vector<2x128xf32> to vector<2x32xf32>
    %125 = vector.extract_strided_slice %122 {offsets = [0, 32], sizes = [2, 32], strides = [1, 1]} : vector<2x128xf32> to vector<2x32xf32>
    %126 = vector.extract_strided_slice %123 {offsets = [0, 64], sizes = [2, 32], strides = [1, 1]} : vector<2x128xf32> to vector<2x32xf32>
    %127 = vector.extract_strided_slice %122 {offsets = [0, 96], sizes = [2, 32], strides = [1, 1]} : vector<2x128xf32> to vector<2x32xf32>
    %128 = arith.mulf %125, %105 : vector<2x32xf32>
    %129 = arith.mulf %124, %126 : vector<2x32xf32>
    %130 = arith.addf %128, %129 : vector<2x32xf32>
    %131 = math.tanh %130 : vector<2x32xf32>
    %132 = arith.mulf %127, %131 : vector<2x32xf32>
    %133 = math.tanh %132 : vector<2x32xf32>
    %134 = arith.truncf %133 : vector<2x32xf32> to vector<2x32xbf16>
    %c128 = arith.constant 128 : index
    %c0_30 = arith.constant 0 : index
    %135 = vector.load %arg5[%c128, %c0_30] : memref<256x32xbf16, #tpu.memory_space<vmem>>, vector<32x32xbf16>
    %cst_31 = arith.constant dense<0.000000e+00> : vector<2x32xf32>
    %136 = tpu.matmul %134, %135, %cst_31 {dimension_numbers = #tpu.dot_dimension_numbers<[1], [0], [0], [1], [0, 0, 1, 1], [], []>} : vector<2x32xbf16>, vector<32x32xbf16>, vector<2x32xf32> -> vector<2x32xf32>
    %137 = arith.addf %112, %136 : vector<2x32xf32>
    %138 = vector.extract_strided_slice %8 {offsets = [0, 5, 0], sizes = [2, 1, 128], strides = [1, 1, 1]} : vector<2x8x128xf32> to vector<2x1x128xf32>
    %139 = vector.shape_cast %138 : vector<2x1x128xf32> to vector<2x128xf32>
    %140 = arith.truncf %132 : vector<2x32xf32> to vector<2x32xbf16>
    %cst_32 = arith.constant dense<0.000000e+00> : vector<2x128xf32>
    %141 = tpu.matmul %140, %9, %cst_32 {dimension_numbers = #tpu.dot_dimension_numbers<[1], [0], [0], [1], [0, 0, 1, 1], [], []>} : vector<2x32xbf16>, vector<32x128xbf16>, vector<2x128xf32> -> vector<2x128xf32>
    %142 = arith.addf %139, %141 : vector<2x128xf32>
    %143 = arith.negf %142 : vector<2x128xf32>
    %144 = math.exp %143 : vector<2x128xf32>
    %cst_33 = arith.constant 1.000000e+00 : f32
    %145 = vector.broadcast %cst_33 : f32 to vector<2x128xf32>
    %146 = arith.addf %145, %144 : vector<2x128xf32>
    %147 = arith.divf %145, %146 : vector<2x128xf32>
    %148 = math.tanh %142 : vector<2x128xf32>
    %149 = vector.extract_strided_slice %147 {offsets = [0, 0], sizes = [2, 32], strides = [1, 1]} : vector<2x128xf32> to vector<2x32xf32>
    %150 = vector.extract_strided_slice %147 {offsets = [0, 32], sizes = [2, 32], strides = [1, 1]} : vector<2x128xf32> to vector<2x32xf32>
    %151 = vector.extract_strided_slice %148 {offsets = [0, 64], sizes = [2, 32], strides = [1, 1]} : vector<2x128xf32> to vector<2x32xf32>
    %152 = vector.extract_strided_slice %147 {offsets = [0, 96], sizes = [2, 32], strides = [1, 1]} : vector<2x128xf32> to vector<2x32xf32>
    %153 = arith.mulf %150, %130 : vector<2x32xf32>
    %154 = arith.mulf %149, %151 : vector<2x32xf32>
    %155 = arith.addf %153, %154 : vector<2x32xf32>
    %156 = math.tanh %155 : vector<2x32xf32>
    %157 = arith.mulf %152, %156 : vector<2x32xf32>
    %158 = math.tanh %157 : vector<2x32xf32>
    %159 = arith.truncf %158 : vector<2x32xf32> to vector<2x32xbf16>
    %c160 = arith.constant 160 : index
    %c0_34 = arith.constant 0 : index
    %160 = vector.load %arg5[%c160, %c0_34] : memref<256x32xbf16, #tpu.memory_space<vmem>>, vector<32x32xbf16>
    %cst_35 = arith.constant dense<0.000000e+00> : vector<2x32xf32>
    %161 = tpu.matmul %159, %160, %cst_35 {dimension_numbers = #tpu.dot_dimension_numbers<[1], [0], [0], [1], [0, 0, 1, 1], [], []>} : vector<2x32xbf16>, vector<32x32xbf16>, vector<2x32xf32> -> vector<2x32xf32>
    %162 = arith.addf %137, %161 : vector<2x32xf32>
    %163 = vector.extract_strided_slice %8 {offsets = [0, 6, 0], sizes = [2, 1, 128], strides = [1, 1, 1]} : vector<2x8x128xf32> to vector<2x1x128xf32>
    %164 = vector.shape_cast %163 : vector<2x1x128xf32> to vector<2x128xf32>
    %165 = arith.truncf %157 : vector<2x32xf32> to vector<2x32xbf16>
    %cst_36 = arith.constant dense<0.000000e+00> : vector<2x128xf32>
    %166 = tpu.matmul %165, %9, %cst_36 {dimension_numbers = #tpu.dot_dimension_numbers<[1], [0], [0], [1], [0, 0, 1, 1], [], []>} : vector<2x32xbf16>, vector<32x128xbf16>, vector<2x128xf32> -> vector<2x128xf32>
    %167 = arith.addf %164, %166 : vector<2x128xf32>
    %168 = arith.negf %167 : vector<2x128xf32>
    %169 = math.exp %168 : vector<2x128xf32>
    %cst_37 = arith.constant 1.000000e+00 : f32
    %170 = vector.broadcast %cst_37 : f32 to vector<2x128xf32>
    %171 = arith.addf %170, %169 : vector<2x128xf32>
    %172 = arith.divf %170, %171 : vector<2x128xf32>
    %173 = math.tanh %167 : vector<2x128xf32>
    %174 = vector.extract_strided_slice %172 {offsets = [0, 0], sizes = [2, 32], strides = [1, 1]} : vector<2x128xf32> to vector<2x32xf32>
    %175 = vector.extract_strided_slice %172 {offsets = [0, 32], sizes = [2, 32], strides = [1, 1]} : vector<2x128xf32> to vector<2x32xf32>
    %176 = vector.extract_strided_slice %173 {offsets = [0, 64], sizes = [2, 32], strides = [1, 1]} : vector<2x128xf32> to vector<2x32xf32>
    %177 = vector.extract_strided_slice %172 {offsets = [0, 96], sizes = [2, 32], strides = [1, 1]} : vector<2x128xf32> to vector<2x32xf32>
    %178 = arith.mulf %175, %155 : vector<2x32xf32>
    %179 = arith.mulf %174, %176 : vector<2x32xf32>
    %180 = arith.addf %178, %179 : vector<2x32xf32>
    %181 = math.tanh %180 : vector<2x32xf32>
    %182 = arith.mulf %177, %181 : vector<2x32xf32>
    %183 = math.tanh %182 : vector<2x32xf32>
    %184 = arith.truncf %183 : vector<2x32xf32> to vector<2x32xbf16>
    %c192 = arith.constant 192 : index
    %c0_38 = arith.constant 0 : index
    %185 = vector.load %arg5[%c192, %c0_38] : memref<256x32xbf16, #tpu.memory_space<vmem>>, vector<32x32xbf16>
    %cst_39 = arith.constant dense<0.000000e+00> : vector<2x32xf32>
    %186 = tpu.matmul %184, %185, %cst_39 {dimension_numbers = #tpu.dot_dimension_numbers<[1], [0], [0], [1], [0, 0, 1, 1], [], []>} : vector<2x32xbf16>, vector<32x32xbf16>, vector<2x32xf32> -> vector<2x32xf32>
    %187 = arith.addf %162, %186 : vector<2x32xf32>
    %188 = vector.extract_strided_slice %8 {offsets = [0, 7, 0], sizes = [2, 1, 128], strides = [1, 1, 1]} : vector<2x8x128xf32> to vector<2x1x128xf32>
    %189 = vector.shape_cast %188 : vector<2x1x128xf32> to vector<2x128xf32>
    %190 = arith.truncf %182 : vector<2x32xf32> to vector<2x32xbf16>
    %cst_40 = arith.constant dense<0.000000e+00> : vector<2x128xf32>
    %191 = tpu.matmul %190, %9, %cst_40 {dimension_numbers = #tpu.dot_dimension_numbers<[1], [0], [0], [1], [0, 0, 1, 1], [], []>} : vector<2x32xbf16>, vector<32x128xbf16>, vector<2x128xf32> -> vector<2x128xf32>
    %192 = arith.addf %189, %191 : vector<2x128xf32>
    %193 = arith.negf %192 : vector<2x128xf32>
    %194 = math.exp %193 : vector<2x128xf32>
    %cst_41 = arith.constant 1.000000e+00 : f32
    %195 = vector.broadcast %cst_41 : f32 to vector<2x128xf32>
    %196 = arith.addf %195, %194 : vector<2x128xf32>
    %197 = arith.divf %195, %196 : vector<2x128xf32>
    %198 = math.tanh %192 : vector<2x128xf32>
    %199 = vector.extract_strided_slice %197 {offsets = [0, 0], sizes = [2, 32], strides = [1, 1]} : vector<2x128xf32> to vector<2x32xf32>
    %200 = vector.extract_strided_slice %197 {offsets = [0, 32], sizes = [2, 32], strides = [1, 1]} : vector<2x128xf32> to vector<2x32xf32>
    %201 = vector.extract_strided_slice %198 {offsets = [0, 64], sizes = [2, 32], strides = [1, 1]} : vector<2x128xf32> to vector<2x32xf32>
    %202 = vector.extract_strided_slice %197 {offsets = [0, 96], sizes = [2, 32], strides = [1, 1]} : vector<2x128xf32> to vector<2x32xf32>
    %203 = arith.mulf %200, %180 : vector<2x32xf32>
    %204 = arith.mulf %199, %201 : vector<2x32xf32>
    %205 = arith.addf %203, %204 : vector<2x32xf32>
    %206 = math.tanh %205 : vector<2x32xf32>
    %207 = arith.mulf %202, %206 : vector<2x32xf32>
    %208 = math.tanh %207 : vector<2x32xf32>
    %209 = arith.truncf %208 : vector<2x32xf32> to vector<2x32xbf16>
    %c224 = arith.constant 224 : index
    %c0_42 = arith.constant 0 : index
    %210 = vector.load %arg5[%c224, %c0_42] : memref<256x32xbf16, #tpu.memory_space<vmem>>, vector<32x32xbf16>
    %cst_43 = arith.constant dense<0.000000e+00> : vector<2x32xf32>
    %211 = tpu.matmul %209, %210, %cst_43 {dimension_numbers = #tpu.dot_dimension_numbers<[1], [0], [0], [1], [0, 0, 1, 1], [], []>} : vector<2x32xbf16>, vector<32x32xbf16>, vector<2x32xf32> -> vector<2x32xf32>
    %212 = arith.addf %187, %211 : vector<2x32xf32>
    %c0_44 = arith.constant 0 : index
    %c0_45 = arith.constant 0 : index
    %213 = vector.load %arg6[%c0_44, %c0_45] : memref<1x32xf32, #tpu.memory_space<vmem>>, vector<1x32xf32>
    %214 = vector.broadcast %213 : vector<1x32xf32> to vector<2x32xf32>
    %215 = arith.addf %212, %214 : vector<2x32xf32>
    %c0_46 = arith.constant 0 : index
    %c0_47 = arith.constant 0 : index
    %216 = vector.load %arg7[%c0_46, %c0_47] : memref<32x2xf32, #tpu.memory_space<vmem>>, vector<32x2xf32>
    %cst_48 = arith.constant dense<0.000000e+00> : vector<2x2xf32>
    %217 = tpu.matmul %215, %216, %cst_48 {dimension_numbers = #tpu.dot_dimension_numbers<[1], [0], [0], [1], [0, 0, 1, 1], [], []>} : vector<2x32xf32>, vector<32x2xf32>, vector<2x2xf32> -> vector<2x2xf32>
    %c0_49 = arith.constant 0 : index
    %c0_50 = arith.constant 0 : index
    %218 = vector.load %arg8[%c0_49, %c0_50] : memref<1x2xf32, #tpu.memory_space<vmem>>, vector<1x2xf32>
    %219 = vector.broadcast %218 : vector<1x2xf32> to vector<2x2xf32>
    %220 = arith.addf %217, %219 : vector<2x2xf32>
    %cst_51 = arith.constant dense<0xFF800000> : vector<2xf32>
    %221 = vector.multi_reduction <maximumf>, %220, %cst_51 [1] : vector<2x2xf32> to vector<2xf32>
    %222 = vector.shape_cast %221 : vector<2xf32> to vector<2x1xf32>
    %223 = vector.broadcast %222 : vector<2x1xf32> to vector<2x2xf32>
    %224 = arith.subf %220, %223 : vector<2x2xf32>
    %225 = math.exp %224 : vector<2x2xf32>
    %cst_52 = arith.constant dense<0.000000e+00> : vector<2xf32>
    %226 = vector.multi_reduction <add>, %225, %cst_52 [1] : vector<2x2xf32> to vector<2xf32>
    %227 = vector.shape_cast %226 : vector<2xf32> to vector<2x1xf32>
    %228 = math.log %227 : vector<2x1xf32>
    %229 = arith.addf %222, %228 : vector<2x1xf32>
    %230 = vector.broadcast %229 : vector<2x1xf32> to vector<2x2xf32>
    %231 = arith.subf %220, %230 : vector<2x2xf32>
    %c0_53 = arith.constant 0 : index
    %c0_54 = arith.constant 0 : index
    %232 = vector.load %arg9[%c0_53, %c0_54] : memref<2x2xf32, #tpu.memory_space<vmem>>, vector<2x2xf32>
    tpu.vector_store %arg9[%c0_53, %c0_54], %231 {strides = array<i32>} : memref<2x2xf32, #tpu.memory_space<vmem>>, vector<2x2xf32>,
    return
  }
  func.func @transform_0(%arg0: i32) -> (i32, i32, i32) {
    %c0_i32 = arith.constant 0 : i32
    %c0_i32_0 = arith.constant 0 : i32
    %c0_i32_1 = arith.constant 0 : i32
    return %arg0, %c0_i32, %c0_i32_0 : i32, i32, i32
  }
  func.func @transform_1(%arg0: i32) -> (i32, i32) {
    %c0_i32 = arith.constant 0 : i32
    %c0_i32_0 = arith.constant 0 : i32
    %c0_i32_1 = arith.constant 0 : i32
    return %c0_i32, %c0_i32_0 : i32, i32
  }
  func.func @transform_2(%arg0: i32) -> (i32, i32) {
    %c0_i32 = arith.constant 0 : i32
    %c0_i32_0 = arith.constant 0 : i32
    %c0_i32_1 = arith.constant 0 : i32
    return %c0_i32, %c0_i32_0 : i32, i32
  }
  func.func @transform_3(%arg0: i32) -> (i32, i32) {
    %c0_i32 = arith.constant 0 : i32
    %c0_i32_0 = arith.constant 0 : i32
    %c0_i32_1 = arith.constant 0 : i32
    return %c0_i32, %c0_i32_0 : i32, i32
  }
  func.func @transform_4(%arg0: i32) -> (i32, i32) {
    %c0_i32 = arith.constant 0 : i32
    %c0_i32_0 = arith.constant 0 : i32
    %c0_i32_1 = arith.constant 0 : i32
    return %c0_i32, %c0_i32_0 : i32, i32
  }
  func.func @transform_5(%arg0: i32) -> (i32, i32) {
    %c0_i32 = arith.constant 0 : i32
    %c0_i32_0 = arith.constant 0 : i32
    %c0_i32_1 = arith.constant 0 : i32
    return %c0_i32, %c0_i32_0 : i32, i32
  }
  func.func @transform_6(%arg0: i32) -> (i32, i32) {
    %c0_i32 = arith.constant 0 : i32
    %c0_i32_0 = arith.constant 0 : i32
    %c0_i32_1 = arith.constant 0 : i32
    return %c0_i32, %c0_i32_0 : i32, i32
  }
  func.func @transform_7(%arg0: i32) -> (i32, i32) {
    %c0_i32 = arith.constant 0 : i32
    %c0_i32_0 = arith.constant 0 : i32
    %c0_i32_1 = arith.constant 0 : i32
    return %c0_i32, %c0_i32_0 : i32, i32
  }
  func.func @transform_8(%arg0: i32) -> (i32, i32) {
    %c0_i32 = arith.constant 0 : i32
    %c0_i32_0 = arith.constant 0 : i32
    return %arg0, %c0_i32 : i32, i32
  }
}

</mosaic_0001>

<llo_original>
// kernel: bert_classifier_forward.1
$region0: #{bert_classifier_forward.1}
  #allocation0 [shape = 'u32[]', space=smem, size = 0x4, offset = 0x4, fixed_abs, tag = 'smem constant byte address 0x4 - core index']
  #allocation1 [shape = 'u32[72,128]{1,0:T(1,128)}', space=vmem, size = 0x9000, scoped, tag = 'internal scratch']
  %s0 = inlined_call_operand.vmem [shape: f32[2,8,128], index: 0, kind: input, shape index: {}]
  %s1 = inlined_call_operand.vmem [shape: bf16[128,128], index: 1, kind: input, shape index: {}]
  %s2 = inlined_call_operand.vmem [shape: bf16[32,128], index: 2, kind: input, shape index: {}]
  %s3 = inlined_call_operand.vmem [shape: f32[1,128], index: 3, kind: input, shape index: {}]
  %s4 = inlined_call_operand.vmem [shape: bf16[256,32], index: 4, kind: input, shape index: {}]
  %s5 = inlined_call_operand.vmem [shape: f32[1,32], index: 5, kind: input, shape index: {}]
  %s6 = inlined_call_operand.vmem [shape: f32[32,2], index: 6, kind: input, shape index: {}]
  %s7 = inlined_call_operand.vmem [shape: f32[1,2], index: 7, kind: input, shape index: {}]
  %s8 = inlined_call_operand.hbm [shape: f32[2,2], index: 8, kind: output, shape index: {}]
  %s9 = sld [smem:[#allocation0]]
  $region42: #{bert_classifier_forward.1} parent=0
    _
  %s11 = ssub.s32 1, %s9
  %s12 = scalar_select 0, %s11, %s9
  $region1: #{bert_classifier_forward.1} parent=0
    #allocation2 [shape = 'u8[1024]{0}', space=vmem, size = 0x400, scoped, tag = 'output window, operand 0, single buffered']
    #allocation3 [shape = 's32[1]{0}', space=sflag, size = 0x4, scoped, tag = 'scoped memory for bert_classifier_forward.1']
    %13 = vsyncpa [#allocation3], 0
    // Predicated region
    $region2: #{bert_classifier_forward.1} parent=1 // pred_check
      _
    $region3: #{bert_classifier_forward.1} parent=1 // pred_check_branch
      %15 = sbr.rel (0) target = $region5
    $region4: #{bert_classifier_forward.1} parent=1 // pred_region
      _
    $region5: #{bert_classifier_forward.1} parent=1 // pred_fallthru
      _
    // Predicated region
    $region6: #{bert_classifier_forward.1} parent=1 // pred_check
      _
    $region7: #{bert_classifier_forward.1} parent=1 // pred_check_branch
      %17 = sbr.rel (0) target = $region9
    $region8: #{bert_classifier_forward.1} parent=1 // pred_region
      _
    $region9: #{bert_classifier_forward.1} parent=1 // pred_fallthru
      _
    // Predicated region
    $region10: #{bert_classifier_forward.1} parent=1 // pred_check
      _
    $region11: #{bert_classifier_forward.1} parent=1 // pred_check_branch
      %19 = sbr.rel (0) target = $region13
    $region12: #{bert_classifier_forward.1} parent=1 // pred_region
      _
    $region13: #{bert_classifier_forward.1} parent=1 // pred_fallthru
      _
    // Predicated region
    $region14: #{bert_classifier_forward.1} parent=1 // pred_check
      _
    $region15: #{bert_classifier_forward.1} parent=1 // pred_check_branch
      %21 = sbr.rel (0) target = $region17
    $region16: #{bert_classifier_forward.1} parent=1 // pred_region
      _
    $region17: #{bert_classifier_forward.1} parent=1 // pred_fallthru
      _
    // Predicated region
    $region18: #{bert_classifier_forward.1} parent=1 // pred_check
      _
    $region19: #{bert_classifier_forward.1} parent=1 // pred_check_branch
      %23 = sbr.rel (0) target = $region21
    $region20: #{bert_classifier_forward.1} parent=1 // pred_region
      _
    $region21: #{bert_classifier_forward.1} parent=1 // pred_fallthru
      _
    // Predicated region
    $region22: #{bert_classifier_forward.1} parent=1 // pred_check
      _
    $region23: #{bert_classifier_forward.1} parent=1 // pred_check_branch
      %25 = sbr.rel (0) target = $region25
    $region24: #{bert_classifier_forward.1} parent=1 // pred_region
      _
    $region25: #{bert_classifier_forward.1} parent=1 // pred_fallthru
      _
    // Predicated region
    $region26: #{bert_classifier_forward.1} parent=1 // pred_check
      _
    $region27: #{bert_classifier_forward.1} parent=1 // pred_check_branch
      %27 = sbr.rel (0) target = $region29
    $region28: #{bert_classifier_forward.1} parent=1 // pred_region
      _
    $region29: #{bert_classifier_forward.1} parent=1 // pred_fallthru
      _
    // Predicated region
    $region30: #{bert_classifier_forward.1} parent=1 // pred_check
      _
    $region31: #{bert_classifier_forward.1} parent=1 // pred_check_branch
      %29 = sbr.rel (0) target = $region33
    $region32: #{bert_classifier_forward.1} parent=1 // pred_region
      _
    $region33: #{bert_classifier_forward.1} parent=1 // pred_fallthru
      _
    %v31 = vld [vmem:[%s0] sm:$0xff]
    %v32 = vld [vmem:[%s0 + $0x8] sm:$0xff]
    %v33 = vpack.c.bf16 %v32, %v31
    %v34 = vld [vmem:[%s1] sm:$0xf]
    %v35 = vld [vmem:[%s1 + $0x4] sm:$0xf]
    %v36 = vld [vmem:[%s1 + $0x8] sm:$0xf]
    %v37 = vld [vmem:[%s1 + $0xc] sm:$0xf]
    %v38 = vld [vmem:[%s1 + $0x10] sm:$0xf]
    %v39 = vld [vmem:[%s1 + $0x14] sm:$0xf]
    %v40 = vld [vmem:[%s1 + $0x18] sm:$0xf]
    %v41 = vld [vmem:[%s1 + $0x1c] sm:$0xf]
    %v42 = vld [vmem:[%s1 + $0x20] sm:$0xf]
    %v43 = vld [vmem:[%s1 + $0x24] sm:$0xf]
    %v44 = vld [vmem:[%s1 + $0x28] sm:$0xf]
    %v45 = vld [vmem:[%s1 + $0x2c] sm:$0xf]
    %v46 = vld [vmem:[%s1 + $0x30] sm:$0xf]
    %v47 = vld [vmem:[%s1 + $0x34] sm:$0xf]
    %v48 = vld [vmem:[%s1 + $0x38] sm:$0xf]
    %v49 = vld [vmem:[%s1 + $0x3c] sm:$0xf]
    %v50 = vld [vmem:[%s3] sm:$0x1]
    %v52 = vperm.slane %v50, 0
    %v70 = vunpack.c.l.b16 %v34
    %v71 = vunpack.c.l.b16 %v35
    %v72 = vunpack.c.l.b16 %v36
    %v73 = vunpack.c.l.b16 %v37
    %v74 = vunpack.c.l.b16 %v38
    %v75 = vunpack.c.l.b16 %v39
    %v76 = vunpack.c.l.b16 %v40
    %v77 = vunpack.c.l.b16 %v41
    %v78 = vunpack.c.l.b16 %v42
    %v79 = vunpack.c.l.b16 %v43
    %v80 = vunpack.c.l.b16 %v44
    %v81 = vunpack.c.l.b16 %v45
    %v82 = vunpack.c.l.b16 %v46
    %v83 = vunpack.c.l.b16 %v47
    %v84 = vunpack.c.l.b16 %v48
    %v85 = vunpack.c.l.b16 %v49
    %v86 = vpack.c.b16 %v71, %v70
    %v87 = vpack.c.b16 %v73, %v72
    %v88 = vpack.c.b16 %v75, %v74
    %v89 = vpack.c.b16 %v77, %v76
    %v90 = vpack.c.b16 %v79, %v78
    %v91 = vpack.c.b16 %v81, %v80
    %v92 = vpack.c.b16 %v83, %v82
    %v93 = vpack.c.b16 %v85, %v84
    %102 = vmatpush.bf16.msra.mxu0 %v93
    %103 = vmatpush.bf16.msra.mxu0 %v92
    %104 = vmatpush.bf16.msra.mxu0 %v91
    %105 = vmatpush.bf16.msra.mxu0 %v90
    %106 = vmatpush.bf16.msra.mxu0 %v89
    %107 = vmatpush.bf16.msra.mxu0 %v88
    %108 = vmatpush.bf16.msra.mxu0 %v87
    %109 = vmatpush.bf16.msra.mxu0 %v86
    %110 = vmatmul.bf16.gmra.mxu0 %v33
    %v111 = vpop.f32.mrf.mxu0
    %v112 = vadd.f32 %v52, %v111
    %v113 = vpop.f32.mrf.mxu0
    %v114 = vadd.f32 %v52, %v113
    %115 = vdwg.mxu0
    %v116 = vld [vmem:[%s2] sm:$0xf]
    %v117 = vld [vmem:[%s2 + $0x4] sm:$0xf]
    %v118 = vld [vmem:[%s2 + $0x8] sm:$0xf]
    %v119 = vld [vmem:[%s2 + $0xc] sm:$0xf]
    %v124 = vunpack.c.l.b16 %v116
    %v125 = vunpack.c.l.b16 %v117
    %v126 = vunpack.c.l.b16 %v118
    %v127 = vunpack.c.l.b16 %v119
    %v128 = vpack.c.b16 %v125, %v124
    %v129 = vpack.c.b16 %v127, %v126
    %vm132 = vcmask 261120
    %v134 = vsel %vm132, 0, 0
    %136 = vmatpush.bf16.msra.mxu0 0
    %137 = vmatpush.bf16.msra.mxu0 0
    %138 = vmatpush.bf16.msra.mxu0 0
    %139 = vmatpush.bf16.msra.mxu0 0
    %140 = vmatpush.bf16.msra.mxu0 0
    %141 = vmatpush.bf16.msra.mxu0 0
    %142 = vmatpush.bf16.msra.mxu0 %v129
    %143 = vmatpush.bf16.msra.mxu0 %v128
    %144 = vmatmul.bf16.gmra.mxu0 %v134
    %v145 = vpop.f32.mrf.mxu0
    %v146 = vadd.f32 0.0, %v145
    %v147 = vpop.f32.mrf.mxu0
    %148 = vdwg.mxu0
    %v150 = vrot.slane %v146, 1
    %v153 = vadd.f32 %v112, %v146
    %v154 = vadd.f32 %v114, %v150
    %v155 = vxor.u32 %v153, 2147483648
    %v156 = vxor.u32 %v154, 2147483648
    %v157 = vmul.f32 %v155, 1.442695
    %v158 = vpow.pop %v157
    %v159 = vmul.f32 %v156, 1.442695
    %v160 = vpow.pop %v159
    %v161 = vadd.f32 %v158, 1.0
    %v162 = vadd.f32 %v160, 1.0
    %v163 = vrcp.pop %v161
    %v164 = vmul.f32 %v161, %v163
    %v165 = vsub.f32 1.0, %v164
    %v166 = vmul.f32 %v163, %v165
    %v167 = vadd.f32 %v163, %v166
    %vm168 = vweird.f32 %v161
    %vm169 = vweird.f32 %v163
    %vm170 = vmor %vm168, %vm169
    %v171 = vsel %vm170, %v163, %v167
    %v172 = vand.u32 2147483647, %v161
    %vm173 = vcmp.eq.f32.partialorder %v172, 8.507059e+37
    %v174 = vand.u32 %v161, 2147483648
    %v175 = vor.u32 1.1754944e-38, %v174
    %v176 = vsel %vm173, %v175, %v171
    %v177 = vmul.f32 1.0, %v176
    %v178 = vrcp.pop %v162
    %v179 = vmul.f32 %v162, %v178
    %v180 = vsub.f32 1.0, %v179
    %v181 = vmul.f32 %v178, %v180
    %v182 = vadd.f32 %v178, %v181
    %vm183 = vweird.f32 %v162
    %vm184 = vweird.f32 %v178
    %vm185 = vmor %vm183, %vm184
    %v186 = vsel %vm185, %v178, %v182
    %v187 = vand.u32 2147483647, %v162
    %vm188 = vcmp.eq.f32.partialorder %v187, 8.507059e+37
    %v189 = vand.u32 %v162, 2147483648
    %v190 = vor.u32 1.1754944e-38, %v189
    %v191 = vsel %vm188, %v190, %v186
    %v192 = vmul.f32 1.0, %v191
    %v193 = vtanh.pop %v153
    %v194 = vtanh.pop %v154
    %v195 = vmul.f32 %v177, 0.0
    %v196 = vmul.f32 %v192, 0.0
    %199 = vrot.lane.b32.xlu0 %v193, 64
    %v200 = vpop.permute.xlu0 %199
    %201 = vrot.lane.b32.xlu0 %v194, 64
    %v202 = vpop.permute.xlu0 %201
    %v205 = vmul.f32 %v177, %v200
    %v206 = vmul.f32 %v192, %v202
    %209 = vrot.lane.b32.xlu0 %v205, 32
    %v210 = vpop.permute.xlu0 %209
    %211 = vrot.lane.b32.xlu0 %v206, 32
    %v212 = vpop.permute.xlu0 %211
    %v215 = vadd.f32 %v195, %v210
    %v216 = vadd.f32 %v196, %v212
    %v217 = vtanh.pop %v215
    %v218 = vtanh.pop %v216
    %221 = vrot.lane.b32.xlu0 %v217, 64
    %v222 = vpop.permute.xlu0 %221
    %223 = vrot.lane.b32.xlu0 %v218, 64
    %v224 = vpop.permute.xlu0 %223
    %v227 = vmul.f32 %v177, %v222
    %v228 = vmul.f32 %v192, %v224
    %v229 = vtanh.pop %v227
    %v230 = vtanh.pop %v228
    %v231 = vpack.c.bf16 %v229, %v229
    %v232 = vpack.c.bf16 %v230, %v230
    %v233 = vld [vmem:[%s4] sm:$0xf]
    %v234 = vld [vmem:[%s4 + $0x4] sm:$0xf]
    %v235 = vld [vmem:[%s4 + $0x8] sm:$0xf]
    %v236 = vld [vmem:[%s4 + $0xc] sm:$0xf]
    %v237 = vpack.c.bf16 %v227, %v227
    %v238 = vpack.c.bf16 %v228, %v228
    %v241 = vunpack.c.l.b16 %v237
    %v242 = vunpack.c.l.b16 %v238
    %v243 = vrot.slane %v242, 7
    %vm244 = vcmask 1041409
    %v245 = vsel %vm244, %v243, %v241
    %v246 = vpack.c.b16 %v245, %v245
    %247 = vrot.lane.b32.xlu0 %v246, 32
    %v248 = vpop.permute.xlu0 %247
    %v250 = vsel %vm132, %v248, 0
    %252 = vmatpush.bf16.msra.mxu0 0
    %253 = vmatpush.bf16.msra.mxu0 0
    %254 = vmatpush.bf16.msra.mxu0 0
    %255 = vmatpush.bf16.msra.mxu0 0
    %256 = vmatpush.bf16.msra.mxu0 0
    %257 = vmatpush.bf16.msra.mxu0 0
    %258 = vmatpush.bf16.msra.mxu0 %v129
    %259 = vmatpush.bf16.msra.mxu0 %v128
    %260 = vmatmul.bf16.gmra.mxu0 %v250
    %v261 = vpop.f32.mrf.mxu0
    %v262 = vadd.f32 0.0, %v261
    %v263 = vpop.f32.mrf.mxu0
    %264 = vdwg.mxu0
    %v266 = vrot.slane %v262, 7
    %v269 = vadd.f32 %v112, %v266
    %v270 = vadd.f32 %v114, %v262
    %v271 = vxor.u32 %v269, 2147483648
    %v272 = vxor.u32 %v270, 2147483648
    %v273 = vmul.f32 %v271, 1.442695
    %v274 = vpow.pop %v273
    %v275 = vmul.f32 %v272, 1.442695
    %v276 = vpow.pop %v275
    %v277 = vadd.f32 %v274, 1.0
    %v278 = vadd.f32 %v276, 1.0
    %v279 = vrcp.pop %v277
    %v280 = vmul.f32 %v277, %v279
    %v281 = vsub.f32 1.0, %v280
    %v282 = vmul.f32 %v279, %v281
    %v283 = vadd.f32 %v279, %v282
    %vm284 = vweird.f32 %v277
    %vm285 = vweird.f32 %v279
    %vm286 = vmor %vm284, %vm285
    %v287 = vsel %vm286, %v279, %v283
    %v288 = vand.u32 2147483647, %v277
    %vm289 = vcmp.eq.f32.partialorder %v288, 8.507059e+37
    %v290 = vand.u32 %v277, 2147483648
    %v291 = vor.u32 1.1754944e-38, %v290
    %v292 = vsel %vm289, %v291, %v287
    %v293 = vmul.f32 1.0, %v292
    %v294 = vrcp.pop %v278
    %v295 = vmul.f32 %v278, %v294
    %v296 = vsub.f32 1.0, %v295
    %v297 = vmul.f32 %v294, %v296
    %v298 = vadd.f32 %v294, %v297
    %vm299 = vweird.f32 %v278
    %vm300 = vweird.f32 %v294
    %vm301 = vmor %vm299, %vm300
    %v302 = vsel %vm301, %v294, %v298
    %v303 = vand.u32 2147483647, %v278
    %vm304 = vcmp.eq.f32.partialorder %v303, 8.507059e+37
    %v305 = vand.u32 %v278, 2147483648
    %v306 = vor.u32 1.1754944e-38, %v305
    %v307 = vsel %vm304, %v306, %v302
    %v308 = vmul.f32 1.0, %v307
    %v309 = vtanh.pop %v269
    %v310 = vtanh.pop %v270
    %v313 = vrot.slane %v215, 7
    %v314 = vrot.slane %v216, 7
    %v317 = vmul.f32 %v293, %v313
    %v318 = vmul.f32 %v308, %v314
    %321 = vrot.lane.b32.xlu0 %v309, 64
    %v322 = vpop.permute.xlu0 %321
    %323 = vrot.lane.b32.xlu0 %v310, 64
    %v324 = vpop.permute.xlu0 %323
    %v327 = vmul.f32 %v293, %v322
    %v328 = vmul.f32 %v308, %v324
    %331 = vrot.lane.b32.xlu0 %v327, 32
    %v332 = vpop.permute.xlu0 %331
    %333 = vrot.lane.b32.xlu0 %v328, 32
    %v334 = vpop.permute.xlu0 %333
    %v337 = vadd.f32 %v317, %v332
    %v338 = vadd.f32 %v318, %v334
    %v339 = vtanh.pop %v337
    %v340 = vtanh.pop %v338
    %343 = vrot.lane.b32.xlu0 %v339, 64
    %v344 = vpop.permute.xlu0 %343
    %345 = vrot.lane.b32.xlu0 %v340, 64
    %v346 = vpop.permute.xlu0 %345
    %v349 = vmul.f32 %v293, %v344
    %v350 = vmul.f32 %v308, %v346
    %v351 = vtanh.pop %v349
    %v352 = vtanh.pop %v350
    %v353 = vpack.c.bf16 %v351, %v351
    %v354 = vpack.c.bf16 %v352, %v352
    %v355 = vld [vmem:[%s4 + $0x10] sm:$0xf]
    %v356 = vld [vmem:[%s4 + $0x14] sm:$0xf]
    %v357 = vld [vmem:[%s4 + $0x18] sm:$0xf]
    %v358 = vld [vmem:[%s4 + $0x1c] sm:$0xf]
    %v361 = vunpack.c.l.b16 %v353
    %v362 = vunpack.c.l.b16 %v354
    %v363 = vrot.slane %v361, 1
    %v364 = vsel %vm244, %v362, %v363
    %v365 = vpack.c.b16 %v364, %v364
    %366 = vrot.lane.b32.xlu0 %v365, 32
    %v367 = vpop.permute.xlu0 %366
    %v372 = vunpack.c.l.b16 %v355
    %v373 = vunpack.c.l.b16 %v356
    %v374 = vunpack.c.l.b16 %v357
    %v375 = vunpack.c.l.b16 %v358
    %v376 = vpack.c.b16 %v373, %v372
    %v377 = vpack.c.b16 %v375, %v374
    %v381 = vsel %vm132, %v367, 0
    %383 = vmatpush.bf16.msra.mxu0 0
    %384 = vmatpush.bf16.msra.mxu0 0
    %385 = vmatpush.bf16.msra.mxu0 0
    %386 = vmatpush.bf16.msra.mxu0 0
    %387 = vmatpush.bf16.msra.mxu0 0
    %388 = vmatpush.bf16.msra.mxu0 0
    %389 = vmatpush.bf16.msra.mxu0 %v377
    %390 = vmatpush.bf16.msra.mxu0 %v376
    %391 = vmatmul.bf16.gmra.mxu0 %v381
    %v392 = vpop.f32.mrf.mxu0
    %v393 = vadd.f32 0.0, %v392
    %v394 = vpop.f32.mrf.mxu0
    %395 = vdwg.mxu0
    %v398 = vunpack.c.l.b16 %v231
    %v399 = vunpack.c.l.b16 %v232
    %v400 = vrot.slane %v399, 7
    %v401 = vsel %vm244, %v400, %v398
    %v402 = vpack.c.b16 %v401, %v401
    %403 = vrot.lane.b32.xlu0 %v402, 32
    %v404 = vpop.permute.xlu0 %403
    %v409 = vunpack.c.l.b16 %v233
    %v410 = vunpack.c.l.b16 %v234
    %v411 = vunpack.c.l.b16 %v235
    %v412 = vunpack.c.l.b16 %v236
    %v413 = vpack.c.b16 %v410, %v409
    %v414 = vpack.c.b16 %v412, %v411
    %v418 = vsel %vm132, %v404, 0
    %420 = vmatpush.bf16.msra.mxu0 0
    %421 = vmatpush.bf16.msra.mxu0 0
    %422 = vmatpush.bf16.msra.mxu0 0
    %423 = vmatpush.bf16.msra.mxu0 0
    %424 = vmatpush.bf16.msra.mxu0 0
    %425 = vmatpush.bf16.msra.mxu0 0
    %426 = vmatpush.bf16.msra.mxu0 %v414
    %427 = vmatpush.bf16.msra.mxu0 %v413
    %428 = vmatmul.bf16.gmra.mxu0 %v418
    %v429 = vpop.f32.mrf.mxu0
    %v430 = vadd.f32 %v393, %v429
    %v431 = vpop.f32.mrf.mxu0
    %432 = vdwg.mxu0
    %v433 = vpack.c.bf16 %v349, %v349
    %v434 = vpack.c.bf16 %v350, %v350
    %v437 = vunpack.c.l.b16 %v433
    %v438 = vunpack.c.l.b16 %v434
    %v439 = vrot.slane %v437, 1
    %v440 = vsel %vm244, %v438, %v439
    %v441 = vpack.c.b16 %v440, %v440
    %442 = vrot.lane.b32.xlu0 %v441, 32
    %v443 = vpop.permute.xlu0 %442
    %v445 = vsel %vm132, %v443, 0
    %447 = vmatpush.bf16.msra.mxu0 0
    %448 = vmatpush.bf16.msra.mxu0 0
    %449 = vmatpush.bf16.msra.mxu0 0
    %450 = vmatpush.bf16.msra.mxu0 0
    %451 = vmatpush.bf16.msra.mxu0 0
    %452 = vmatpush.bf16.msra.mxu0 0
    %453 = vmatpush.bf16.msra.mxu0 %v129
    %454 = vmatpush.bf16.msra.mxu0 %v128
    %455 = vmatmul.bf16.gmra.mxu0 %v445
    %v456 = vpop.f32.mrf.mxu0
    %v457 = vadd.f32 0.0, %v456
    %v458 = vpop.f32.mrf.mxu0
    %459 = vdwg.mxu0
    %v461 = vrot.slane %v457, 6
    %v462 = vrot.slane %v457, 7
    %v465 = vadd.f32 %v112, %v461
    %v466 = vadd.f32 %v114, %v462
    %v467 = vxor.u32 %v465, 2147483648
    %v468 = vxor.u32 %v466, 2147483648
    %v469 = vmul.f32 %v467, 1.442695
    %v470 = vpow.pop %v469
    %v471 = vmul.f32 %v468, 1.442695
    %v472 = vpow.pop %v471
    %v473 = vadd.f32 %v470, 1.0
    %v474 = vadd.f32 %v472, 1.0
    %v475 = vrcp.pop %v473
    %v476 = vmul.f32 %v473, %v475
    %v477 = vsub.f32 1.0, %v476
    %v478 = vmul.f32 %v475, %v477
    %v479 = vadd.f32 %v475, %v478
    %vm480 = vweird.f32 %v473
    %vm481 = vweird.f32 %v475
    %vm482 = vmor %vm480, %vm481
    %v483 = vsel %vm482, %v475, %v479
    %v484 = vand.u32 2147483647, %v473
    %vm485 = vcmp.eq.f32.partialorder %v484, 8.507059e+37
    %v486 = vand.u32 %v473, 2147483648
    %v487 = vor.u32 1.1754944e-38, %v486
    %v488 = vsel %vm485, %v487, %v483
    %v489 = vmul.f32 1.0, %v488
    %v490 = vrcp.pop %v474
    %v491 = vmul.f32 %v474, %v490
    %v492 = vsub.f32 1.0, %v491
    %v493 = vmul.f32 %v490, %v492
    %v494 = vadd.f32 %v490, %v493
    %vm495 = vweird.f32 %v474
    %vm496 = vweird.f32 %v490
    %vm497 = vmor %vm495, %vm496
    %v498 = vsel %vm497, %v490, %v494
    %v499 = vand.u32 2147483647, %v474
    %vm500 = vcmp.eq.f32.partialorder %v499, 8.507059e+37
    %v501 = vand.u32 %v474, 2147483648
    %v502 = vor.u32 1.1754944e-38, %v501
    %v503 = vsel %vm500, %v502, %v498
    %v504 = vmul.f32 1.0, %v503
    %v505 = vtanh.pop %v465
    %v506 = vtanh.pop %v466
    %v509 = vrot.slane %v337, 7
    %v510 = vrot.slane %v338, 7
    %v513 = vmul.f32 %v489, %v509
    %v514 = vmul.f32 %v504, %v510
    %517 = vrot.lane.b32.xlu0 %v505, 64
    %v518 = vpop.permute.xlu0 %517
    %519 = vrot.lane.b32.xlu0 %v506, 64
    %v520 = vpop.permute.xlu0 %519
    %v523 = vmul.f32 %v489, %v518
    %v524 = vmul.f32 %v504, %v520
    %527 = vrot.lane.b32.xlu0 %v523, 32
    %v528 = vpop.permute.xlu0 %527
    %529 = vrot.lane.b32.xlu0 %v524, 32
    %v530 = vpop.permute.xlu0 %529
    %v533 = vadd.f32 %v513, %v528
    %v534 = vadd.f32 %v514, %v530
    %v535 = vtanh.pop %v533
    %v536 = vtanh.pop %v534
    %539 = vrot.lane.b32.xlu0 %v535, 64
    %v540 = vpop.permute.xlu0 %539
    %541 = vrot.lane.b32.xlu0 %v536, 64
    %v542 = vpop.permute.xlu0 %541
    %v545 = vmul.f32 %v489, %v540
    %v546 = vmul.f32 %v504, %v542
    %v547 = vtanh.pop %v545
    %v548 = vtanh.pop %v546
    %v549 = vpack.c.bf16 %v547, %v547
    %v550 = vpack.c.bf16 %v548, %v548
    %v551 = vld [vmem:[%s4 + $0x20] sm:$0xf]
    %v552 = vld [vmem:[%s4 + $0x24] sm:$0xf]
    %v553 = vld [vmem:[%s4 + $0x28] sm:$0xf]
    %v554 = vld [vmem:[%s4 + $0x2c] sm:$0xf]
    %v557 = vunpack.c.l.b16 %v549
    %v558 = vunpack.c.l.b16 %v550
    %v559 = vrot.slane %v557, 2
    %v560 = vrot.slane %v558, 1
    %v561 = vsel %vm244, %v560, %v559
    %v562 = vpack.c.b16 %v561, %v561
    %563 = vrot.lane.b32.xlu0 %v562, 32
    %v564 = vpop.permute.xlu0 %563
    %v569 = vunpack.c.l.b16 %v551
    %v570 = vunpack.c.l.b16 %v552
    %v571 = vunpack.c.l.b16 %v553
    %v572 = vunpack.c.l.b16 %v554
    %v573 = vpack.c.b16 %v570, %v569
    %v574 = vpack.c.b16 %v572, %v571
    %v578 = vsel %vm132, %v564, 0
    %580 = vmatpush.bf16.msra.mxu0 0
    %581 = vmatpush.bf16.msra.mxu0 0
    %582 = vmatpush.bf16.msra.mxu0 0
    %583 = vmatpush.bf16.msra.mxu0 0
    %584 = vmatpush.bf16.msra.mxu0 0
    %585 = vmatpush.bf16.msra.mxu0 0
    %586 = vmatpush.bf16.msra.mxu0 %v574
    %587 = vmatpush.bf16.msra.mxu0 %v573
    %588 = vmatmul.bf16.gmra.mxu0 %v578
    %v589 = vpop.f32.mrf.mxu0
    %v590 = vadd.f32 0.0, %v589
    %v591 = vpop.f32.mrf.mxu0
    %592 = vdwg.mxu0
    %v593 = vadd.f32 %v430, %v590
    %v594 = vpack.c.bf16 %v545, %v545
    %v595 = vpack.c.bf16 %v546, %v546
    %v598 = vunpack.c.l.b16 %v594
    %v599 = vunpack.c.l.b16 %v595
    %v600 = vrot.slane %v598, 2
    %v601 = vrot.slane %v599, 1
    %v602 = vsel %vm244, %v601, %v600
    %v603 = vpack.c.b16 %v602, %v602
    %604 = vrot.lane.b32.xlu0 %v603, 32
    %v605 = vpop.permute.xlu0 %604
    %v607 = vsel %vm132, %v605, 0
    %609 = vmatpush.bf16.msra.mxu0 0
    %610 = vmatpush.bf16.msra.mxu0 0
    %611 = vmatpush.bf16.msra.mxu0 0
    %612 = vmatpush.bf16.msra.mxu0 0
    %613 = vmatpush.bf16.msra.mxu0 0
    %614 = vmatpush.bf16.msra.mxu0 0
    %615 = vmatpush.bf16.msra.mxu0 %v129
    %616 = vmatpush.bf16.msra.mxu0 %v128
    %617 = vmatmul.bf16.gmra.mxu0 %v607
    %v618 = vpop.f32.mrf.mxu0
    %v619 = vadd.f32 0.0, %v618
    %v620 = vpop.f32.mrf.mxu0
    %621 = vdwg.mxu0
    %v623 = vrot.slane %v619, 5
    %v624 = vrot.slane %v619, 6
    %v627 = vadd.f32 %v112, %v623
    %v628 = vadd.f32 %v114, %v624
    %v629 = vxor.u32 %v627, 2147483648
    %v630 = vxor.u32 %v628, 2147483648
    %v631 = vmul.f32 %v629, 1.442695
    %v632 = vpow.pop %v631
    %v633 = vmul.f32 %v630, 1.442695
    %v634 = vpow.pop %v633
    %v635 = vadd.f32 %v632, 1.0
    %v636 = vadd.f32 %v634, 1.0
    %v637 = vrcp.pop %v635
    %v638 = vmul.f32 %v635, %v637
    %v639 = vsub.f32 1.0, %v638
    %v640 = vmul.f32 %v637, %v639
    %v641 = vadd.f32 %v637, %v640
    %vm642 = vweird.f32 %v635
    %vm643 = vweird.f32 %v637
    %vm644 = vmor %vm642, %vm643
    %v645 = vsel %vm644, %v637, %v641
    %v646 = vand.u32 2147483647, %v635
    %vm647 = vcmp.eq.f32.partialorder %v646, 8.507059e+37
    %v648 = vand.u32 %v635, 2147483648
    %v649 = vor.u32 1.1754944e-38, %v648
    %v650 = vsel %vm647, %v649, %v645
    %v651 = vmul.f32 1.0, %v650
    %v652 = vrcp.pop %v636
    %v653 = vmul.f32 %v636, %v652
    %v654 = vsub.f32 1.0, %v653
    %v655 = vmul.f32 %v652, %v654
    %v656 = vadd.f32 %v652, %v655
    %vm657 = vweird.f32 %v636
    %vm658 = vweird.f32 %v652
    %vm659 = vmor %vm657, %vm658
    %v660 = vsel %vm659, %v652, %v656
    %v661 = vand.u32 2147483647, %v636
    %vm662 = vcmp.eq.f32.partialorder %v661, 8.507059e+37
    %v663 = vand.u32 %v636, 2147483648
    %v664 = vor.u32 1.1754944e-38, %v663
    %v665 = vsel %vm662, %v664, %v660
    %v666 = vmul.f32 1.0, %v665
    %v667 = vtanh.pop %v627
    %v668 = vtanh.pop %v628
    %v671 = vrot.slane %v533, 7
    %v672 = vrot.slane %v534, 7
    %v675 = vmul.f32 %v651, %v671
    %v676 = vmul.f32 %v666, %v672
    %679 = vrot.lane.b32.xlu0 %v667, 64
    %v680 = vpop.permute.xlu0 %679
    %681 = vrot.lane.b32.xlu0 %v668, 64
    %v682 = vpop.permute.xlu0 %681
    %v685 = vmul.f32 %v651, %v680
    %v686 = vmul.f32 %v666, %v682
    %689 = vrot.lane.b32.xlu0 %v685, 32
    %v690 = vpop.permute.xlu0 %689
    %691 = vrot.lane.b32.xlu0 %v686, 32
    %v692 = vpop.permute.xlu0 %691
    %v695 = vadd.f32 %v675, %v690
    %v696 = vadd.f32 %v676, %v692
    %v697 = vtanh.pop %v695
    %v698 = vtanh.pop %v696
    %701 = vrot.lane.b32.xlu0 %v697, 64
    %v702 = vpop.permute.xlu0 %701
    %703 = vrot.lane.b32.xlu0 %v698, 64
    %v704 = vpop.permute.xlu0 %703
    %v707 = vmul.f32 %v651, %v702
    %v708 = vmul.f32 %v666, %v704
    %v709 = vtanh.pop %v707
    %v710 = vtanh.pop %v708
    %v711 = vpack.c.bf16 %v709, %v709
    %v712 = vpack.c.bf16 %v710, %v710
    %v713 = vld [vmem:[%s4 + $0x30] sm:$0xf]
    %v714 = vld [vmem:[%s4 + $0x34] sm:$0xf]
    %v715 = vld [vmem:[%s4 + $0x38] sm:$0xf]
    %v716 = vld [vmem:[%s4 + $0x3c] sm:$0xf]
    %v719 = vunpack.c.l.b16 %v711
    %v720 = vunpack.c.l.b16 %v712
    %v721 = vrot.slane %v719, 3
    %v722 = vrot.slane %v720, 2
    %v723 = vsel %vm244, %v722, %v721
    %v724 = vpack.c.b16 %v723, %v723
    %725 = vrot.lane.b32.xlu0 %v724, 32
    %v726 = vpop.permute.xlu0 %725
    %v731 = vunpack.c.l.b16 %v713
    %v732 = vunpack.c.l.b16 %v714
    %v733 = vunpack.c.l.b16 %v715
    %v734 = vunpack.c.l.b16 %v716
    %v735 = vpack.c.b16 %v732, %v731
    %v736 = vpack.c.b16 %v734, %v733
    %v740 = vsel %vm132, %v726, 0
    %742 = vmatpush.bf16.msra.mxu0 0
    %743 = vmatpush.bf16.msra.mxu0 0
    %744 = vmatpush.bf16.msra.mxu0 0
    %745 = vmatpush.bf16.msra.mxu0 0
    %746 = vmatpush.bf16.msra.mxu0 0
    %747 = vmatpush.bf16.msra.mxu0 0
    %748 = vmatpush.bf16.msra.mxu0 %v736
    %749 = vmatpush.bf16.msra.mxu0 %v735
    %750 = vmatmul.bf16.gmra.mxu0 %v740
    %v751 = vpop.f32.mrf.mxu0
    %v752 = vadd.f32 0.0, %v751
    %v753 = vpop.f32.mrf.mxu0
    %754 = vdwg.mxu0
    %v755 = vadd.f32 %v593, %v752
    %v756 = vpack.c.bf16 %v707, %v707
    %v757 = vpack.c.bf16 %v708, %v708
    %v760 = vunpack.c.l.b16 %v756
    %v761 = vunpack.c.l.b16 %v757
    %v762 = vrot.slane %v760, 3
    %v763 = vrot.slane %v761, 2
    %v764 = vsel %vm244, %v763, %v762
    %v765 = vpack.c.b16 %v764, %v764
    %766 = vrot.lane.b32.xlu0 %v765, 32
    %v767 = vpop.permute.xlu0 %766
    %v769 = vsel %vm132, %v767, 0
    %771 = vmatpush.bf16.msra.mxu0 0
    %772 = vmatpush.bf16.msra.mxu0 0
    %773 = vmatpush.bf16.msra.mxu0 0
    %774 = vmatpush.bf16.msra.mxu0 0
    %775 = vmatpush.bf16.msra.mxu0 0
    %776 = vmatpush.bf16.msra.mxu0 0
    %777 = vmatpush.bf16.msra.mxu0 %v129
    %778 = vmatpush.bf16.msra.mxu0 %v128
    %779 = vmatmul.bf16.gmra.mxu0 %v769
    %v780 = vpop.f32.mrf.mxu0
    %v781 = vadd.f32 0.0, %v780
    %v782 = vpop.f32.mrf.mxu0
    %783 = vdwg.mxu0
    %v785 = vrot.slane %v781, 4
    %v786 = vrot.slane %v781, 5
    %v789 = vadd.f32 %v112, %v785
    %v790 = vadd.f32 %v114, %v786
    %v791 = vxor.u32 %v789, 2147483648
    %v792 = vxor.u32 %v790, 2147483648
    %v793 = vmul.f32 %v791, 1.442695
    %v794 = vpow.pop %v793
    %v795 = vmul.f32 %v792, 1.442695
    %v796 = vpow.pop %v795
    %v797 = vadd.f32 %v794, 1.0
    %v798 = vadd.f32 %v796, 1.0
    %v799 = vrcp.pop %v797
    %v800 = vmul.f32 %v797, %v799
    %v801 = vsub.f32 1.0, %v800
    %v802 = vmul.f32 %v799, %v801
    %v803 = vadd.f32 %v799, %v802
    %vm804 = vweird.f32 %v797
    %vm805 = vweird.f32 %v799
    %vm806 = vmor %vm804, %vm805
    %v807 = vsel %vm806, %v799, %v803
    %v808 = vand.u32 2147483647, %v797
    %vm809 = vcmp.eq.f32.partialorder %v808, 8.507059e+37
    %v810 = vand.u32 %v797, 2147483648
    %v811 = vor.u32 1.1754944e-38, %v810
    %v812 = vsel %vm809, %v811, %v807
    %v813 = vmul.f32 1.0, %v812
    %v814 = vrcp.pop %v798
    %v815 = vmul.f32 %v798, %v814
    %v816 = vsub.f32 1.0, %v815
    %v817 = vmul.f32 %v814, %v816
    %v818 = vadd.f32 %v814, %v817
    %vm819 = vweird.f32 %v798
    %vm820 = vweird.f32 %v814
    %vm821 = vmor %vm819, %vm820
    %v822 = vsel %vm821, %v814, %v818
    %v823 = vand.u32 2147483647, %v798
    %vm824 = vcmp.eq.f32.partialorder %v823, 8.507059e+37
    %v825 = vand.u32 %v798, 2147483648
    %v826 = vor.u32 1.1754944e-38, %v825
    %v827 = vsel %vm824, %v826, %v822
    %v828 = vmul.f32 1.0, %v827
    %v829 = vtanh.pop %v789
    %v830 = vtanh.pop %v790
    %v833 = vrot.slane %v695, 7
    %v834 = vrot.slane %v696, 7
    %v837 = vmul.f32 %v813, %v833
    %v838 = vmul.f32 %v828, %v834
    %841 = vrot.lane.b32.xlu0 %v829, 64
    %v842 = vpop.permute.xlu0 %841
    %843 = vrot.lane.b32.xlu0 %v830, 64
    %v844 = vpop.permute.xlu0 %843
    %v847 = vmul.f32 %v813, %v842
    %v848 = vmul.f32 %v828, %v844
    %851 = vrot.lane.b32.xlu0 %v847, 32
    %v852 = vpop.permute.xlu0 %851
    %853 = vrot.lane.b32.xlu0 %v848, 32
    %v854 = vpop.permute.xlu0 %853
    %v857 = vadd.f32 %v837, %v852
    %v858 = vadd.f32 %v838, %v854
    %v859 = vtanh.pop %v857
    %v860 = vtanh.pop %v858
    %863 = vrot.lane.b32.xlu0 %v859, 64
    %v864 = vpop.permute.xlu0 %863
    %865 = vrot.lane.b32.xlu0 %v860, 64
    %v866 = vpop.permute.xlu0 %865
    %v869 = vmul.f32 %v813, %v864
    %v870 = vmul.f32 %v828, %v866
    %v871 = vtanh.pop %v869
    %v872 = vtanh.pop %v870
    %v873 = vpack.c.bf16 %v871, %v871
    %v874 = vpack.c.bf16 %v872, %v872
    %v875 = vld [vmem:[%s4 + $0x40] sm:$0xf]
    %v876 = vld [vmem:[%s4 + $0x44] sm:$0xf]
    %v877 = vld [vmem:[%s4 + $0x48] sm:$0xf]
    %v878 = vld [vmem:[%s4 + $0x4c] sm:$0xf]
    %v881 = vunpack.c.l.b16 %v873
    %v882 = vunpack.c.l.b16 %v874
    %v883 = vrot.slane %v881, 4
    %v884 = vrot.slane %v882, 3
    %v885 = vsel %vm244, %v884, %v883
    %v886 = vpack.c.b16 %v885, %v885
    %887 = vrot.lane.b32.xlu0 %v886, 32
    %v888 = vpop.permute.xlu0 %887
    %v893 = vunpack.c.l.b16 %v875
    %v894 = vunpack.c.l.b16 %v876
    %v895 = vunpack.c.l.b16 %v877
    %v896 = vunpack.c.l.b16 %v878
    %v897 = vpack.c.b16 %v894, %v893
    %v898 = vpack.c.b16 %v896, %v895
    %v902 = vsel %vm132, %v888, 0
    %904 = vmatpush.bf16.msra.mxu0 0
    %905 = vmatpush.bf16.msra.mxu0 0
    %906 = vmatpush.bf16.msra.mxu0 0
    %907 = vmatpush.bf16.msra.mxu0 0
    %908 = vmatpush.bf16.msra.mxu0 0
    %909 = vmatpush.bf16.msra.mxu0 0
    %910 = vmatpush.bf16.msra.mxu0 %v898
    %911 = vmatpush.bf16.msra.mxu0 %v897
    %912 = vmatmul.bf16.gmra.mxu0 %v902
    %v913 = vpop.f32.mrf.mxu0
    %v914 = vadd.f32 0.0, %v913
    %v915 = vpop.f32.mrf.mxu0
    %916 = vdwg.mxu0
    %v917 = vadd.f32 %v755, %v914
    %v918 = vpack.c.bf16 %v869, %v869
    %v919 = vpack.c.bf16 %v870, %v870
    %v922 = vunpack.c.l.b16 %v918
    %v923 = vunpack.c.l.b16 %v919
    %v924 = vrot.slane %v922, 4
    %v925 = vrot.slane %v923, 3
    %v926 = vsel %vm244, %v925, %v924
    %v927 = vpack.c.b16 %v926, %v926
    %928 = vrot.lane.b32.xlu0 %v927, 32
    %v929 = vpop.permute.xlu0 %928
    %v931 = vsel %vm132, %v929, 0
    %933 = vmatpush.bf16.msra.mxu0 0
    %934 = vmatpush.bf16.msra.mxu0 0
    %935 = vmatpush.bf16.msra.mxu0 0
    %936 = vmatpush.bf16.msra.mxu0 0
    %937 = vmatpush.bf16.msra.mxu0 0
    %938 = vmatpush.bf16.msra.mxu0 0
    %939 = vmatpush.bf16.msra.mxu0 %v129
    %940 = vmatpush.bf16.msra.mxu0 %v128
    %941 = vmatmul.bf16.gmra.mxu0 %v931
    %v942 = vpop.f32.mrf.mxu0
    %v943 = vadd.f32 0.0, %v942
    %v944 = vpop.f32.mrf.mxu0
    %945 = vdwg.mxu0
    %v947 = vrot.slane %v943, 3
    %v948 = vrot.slane %v943, 4
    %v951 = vadd.f32 %v112, %v947
    %v952 = vadd.f32 %v114, %v948
    %v953 = vxor.u32 %v951, 2147483648
    %v954 = vxor.u32 %v952, 2147483648
    %v955 = vmul.f32 %v953, 1.442695
    %v956 = vpow.pop %v955
    %v957 = vmul.f32 %v954, 1.442695
    %v958 = vpow.pop %v957
    %v959 = vadd.f32 %v956, 1.0
    %v960 = vadd.f32 %v958, 1.0
    %v961 = vrcp.pop %v959
    %v962 = vmul.f32 %v959, %v961
    %v963 = vsub.f32 1.0, %v962
    %v964 = vmul.f32 %v961, %v963
    %v965 = vadd.f32 %v961, %v964
    %vm966 = vweird.f32 %v959
    %vm967 = vweird.f32 %v961
    %vm968 = vmor %vm966, %vm967
    %v969 = vsel %vm968, %v961, %v965
    %v970 = vand.u32 2147483647, %v959
    %vm971 = vcmp.eq.f32.partialorder %v970, 8.507059e+37
    %v972 = vand.u32 %v959, 2147483648
    %v973 = vor.u32 1.1754944e-38, %v972
    %v974 = vsel %vm971, %v973, %v969
    %v975 = vmul.f32 1.0, %v974
    %v976 = vrcp.pop %v960
    %v977 = vmul.f32 %v960, %v976
    %v978 = vsub.f32 1.0, %v977
    %v979 = vmul.f32 %v976, %v978
    %v980 = vadd.f32 %v976, %v979
    %vm981 = vweird.f32 %v960
    %vm982 = vweird.f32 %v976
    %vm983 = vmor %vm981, %vm982
    %v984 = vsel %vm983, %v976, %v980
    %v985 = vand.u32 2147483647, %v960
    %vm986 = vcmp.eq.f32.partialorder %v985, 8.507059e+37
    %v987 = vand.u32 %v960, 2147483648
    %v988 = vor.u32 1.1754944e-38, %v987
    %v989 = vsel %vm986, %v988, %v984
    %v990 = vmul.f32 1.0, %v989
    %v991 = vtanh.pop %v951
    %v992 = vtanh.pop %v952
    %v995 = vrot.slane %v857, 7
    %v996 = vrot.slane %v858, 7
    %v999 = vmul.f32 %v975, %v995
    %v1000 = vmul.f32 %v990, %v996
    %1003 = vrot.lane.b32.xlu0 %v991, 64
    %v1004 = vpop.permute.xlu0 %1003
    %1005 = vrot.lane.b32.xlu0 %v992, 64
    %v1006 = vpop.permute.xlu0 %1005
    %v1009 = vmul.f32 %v975, %v1004
    %v1010 = vmul.f32 %v990, %v1006
    %1013 = vrot.lane.b32.xlu0 %v1009, 32
    %v1014 = vpop.permute.xlu0 %1013
    %1015 = vrot.lane.b32.xlu0 %v1010, 32
    %v1016 = vpop.permute.xlu0 %1015
    %v1019 = vadd.f32 %v999, %v1014
    %v1020 = vadd.f32 %v1000, %v1016
    %v1021 = vtanh.pop %v1019
    %v1022 = vtanh.pop %v1020
    %1025 = vrot.lane.b32.xlu0 %v1021, 64
    %v1026 = vpop.permute.xlu0 %1025
    %1027 = vrot.lane.b32.xlu0 %v1022, 64
    %v1028 = vpop.permute.xlu0 %1027
    %v1031 = vmul.f32 %v975, %v1026
    %v1032 = vmul.f32 %v990, %v1028
    %v1033 = vtanh.pop %v1031
    %v1034 = vtanh.pop %v1032
    %v1035 = vpack.c.bf16 %v1033, %v1033
    %v1036 = vpack.c.bf16 %v1034, %v1034
    %v1037 = vld [vmem:[%s4 + $0x50] sm:$0xf]
    %v1038 = vld [vmem:[%s4 + $0x54] sm:$0xf]
    %v1039 = vld [vmem:[%s4 + $0x58] sm:$0xf]
    %v1040 = vld [vmem:[%s4 + $0x5c] sm:$0xf]
    %v1043 = vunpack.c.l.b16 %v1035
    %v1044 = vunpack.c.l.b16 %v1036
    %v1045 = vrot.slane %v1043, 5
    %v1046 = vrot.slane %v1044, 4
    %v1047 = vsel %vm244, %v1046, %v1045
    %v1048 = vpack.c.b16 %v1047, %v1047
    %1049 = vrot.lane.b32.xlu0 %v1048, 32
    %v1050 = vpop.permute.xlu0 %1049
    %v1055 = vunpack.c.l.b16 %v1037
    %v1056 = vunpack.c.l.b16 %v1038
    %v1057 = vunpack.c.l.b16 %v1039
    %v1058 = vunpack.c.l.b16 %v1040
    %v1059 = vpack.c.b16 %v1056, %v1055
    %v1060 = vpack.c.b16 %v1058, %v1057
    %v1064 = vsel %vm132, %v1050, 0
    %1066 = vmatpush.bf16.msra.mxu0 0
    %1067 = vmatpush.bf16.msra.mxu0 0
    %1068 = vmatpush.bf16.msra.mxu0 0
    %1069 = vmatpush.bf16.msra.mxu0 0
    %1070 = vmatpush.bf16.msra.mxu0 0
    %1071 = vmatpush.bf16.msra.mxu0 0
    %1072 = vmatpush.bf16.msra.mxu0 %v1060
    %1073 = vmatpush.bf16.msra.mxu0 %v1059
    %1074 = vmatmul.bf16.gmra.mxu0 %v1064
    %v1075 = vpop.f32.mrf.mxu0
    %v1076 = vadd.f32 0.0, %v1075
    %v1077 = vpop.f32.mrf.mxu0
    %1078 = vdwg.mxu0
    %v1079 = vadd.f32 %v917, %v1076
    %v1080 = vpack.c.bf16 %v1031, %v1031
    %v1081 = vpack.c.bf16 %v1032, %v1032
    %v1084 = vunpack.c.l.b16 %v1080
    %v1085 = vunpack.c.l.b16 %v1081
    %v1086 = vrot.slane %v1084, 5
    %v1087 = vrot.slane %v1085, 4
    %v1088 = vsel %vm244, %v1087, %v1086
    %v1089 = vpack.c.b16 %v1088, %v1088
    %1090 = vrot.lane.b32.xlu0 %v1089, 32
    %v1091 = vpop.permute.xlu0 %1090
    %v1093 = vsel %vm132, %v1091, 0
    %1095 = vmatpush.bf16.msra.mxu0 0
    %1096 = vmatpush.bf16.msra.mxu0 0
    %1097 = vmatpush.bf16.msra.mxu0 0
    %1098 = vmatpush.bf16.msra.mxu0 0
    %1099 = vmatpush.bf16.msra.mxu0 0
    %1100 = vmatpush.bf16.msra.mxu0 0
    %1101 = vmatpush.bf16.msra.mxu0 %v129
    %1102 = vmatpush.bf16.msra.mxu0 %v128
    %1103 = vmatmul.bf16.gmra.mxu0 %v1093
    %v1104 = vpop.f32.mrf.mxu0
    %v1105 = vadd.f32 0.0, %v1104
    %v1106 = vpop.f32.mrf.mxu0
    %1107 = vdwg.mxu0
    %v1109 = vrot.slane %v1105, 2
    %v1110 = vrot.slane %v1105, 3
    %v1113 = vadd.f32 %v112, %v1109
    %v1114 = vadd.f32 %v114, %v1110
    %v1115 = vxor.u32 %v1113, 2147483648
    %v1116 = vxor.u32 %v1114, 2147483648
    %v1117 = vmul.f32 %v1115, 1.442695
    %v1118 = vpow.pop %v1117
    %v1119 = vmul.f32 %v1116, 1.442695
    %v1120 = vpow.pop %v1119
    %v1121 = vadd.f32 %v1118, 1.0
    %v1122 = vadd.f32 %v1120, 1.0
    %v1123 = vrcp.pop %v1121
    %v1124 = vmul.f32 %v1121, %v1123
    %v1125 = vsub.f32 1.0, %v1124
    %v1126 = vmul.f32 %v1123, %v1125
    %v1127 = vadd.f32 %v1123, %v1126
    %vm1128 = vweird.f32 %v1121
    %vm1129 = vweird.f32 %v1123
    %vm1130 = vmor %vm1128, %vm1129
    %v1131 = vsel %vm1130, %v1123, %v1127
    %v1132 = vand.u32 2147483647, %v1121
    %vm1133 = vcmp.eq.f32.partialorder %v1132, 8.507059e+37
    %v1134 = vand.u32 %v1121, 2147483648
    %v1135 = vor.u32 1.1754944e-38, %v1134
    %v1136 = vsel %vm1133, %v1135, %v1131
    %v1137 = vmul.f32 1.0, %v1136
    %v1138 = vrcp.pop %v1122
    %v1139 = vmul.f32 %v1122, %v1138
    %v1140 = vsub.f32 1.0, %v1139
    %v1141 = vmul.f32 %v1138, %v1140
    %v1142 = vadd.f32 %v1138, %v1141
    %vm1143 = vweird.f32 %v1122
    %vm1144 = vweird.f32 %v1138
    %vm1145 = vmor %vm1143, %vm1144
    %v1146 = vsel %vm1145, %v1138, %v1142
    %v1147 = vand.u32 2147483647, %v1122
    %vm1148 = vcmp.eq.f32.partialorder %v1147, 8.507059e+37
    %v1149 = vand.u32 %v1122, 2147483648
    %v1150 = vor.u32 1.1754944e-38, %v1149
    %v1151 = vsel %vm1148, %v1150, %v1146
    %v1152 = vmul.f32 1.0, %v1151
    %v1153 = vtanh.pop %v1113
    %v1154 = vtanh.pop %v1114
    %v1157 = vrot.slane %v1019, 7
    %v1158 = vrot.slane %v1020, 7
    %v1161 = vmul.f32 %v1137, %v1157
    %v1162 = vmul.f32 %v1152, %v1158
    %1165 = vrot.lane.b32.xlu0 %v1153, 64
    %v1166 = vpop.permute.xlu0 %1165
    %1167 = vrot.lane.b32.xlu0 %v1154, 64
    %v1168 = vpop.permute.xlu0 %1167
    %v1171 = vmul.f32 %v1137, %v1166
    %v1172 = vmul.f32 %v1152, %v1168
    %1175 = vrot.lane.b32.xlu0 %v1171, 32
    %v1176 = vpop.permute.xlu0 %1175
    %1177 = vrot.lane.b32.xlu0 %v1172, 32
    %v1178 = vpop.permute.xlu0 %1177
    %v1181 = vadd.f32 %v1161, %v1176
    %v1182 = vadd.f32 %v1162, %v1178
    %v1183 = vtanh.pop %v1181
    %v1184 = vtanh.pop %v1182
    %1187 = vrot.lane.b32.xlu0 %v1183, 64
    %v1188 = vpop.permute.xlu0 %1187
    %1189 = vrot.lane.b32.xlu0 %v1184, 64
    %v1190 = vpop.permute.xlu0 %1189
    %v1193 = vmul.f32 %v1137, %v1188
    %v1194 = vmul.f32 %v1152, %v1190
    %v1195 = vtanh.pop %v1193
    %v1196 = vtanh.pop %v1194
    %v1197 = vpack.c.bf16 %v1195, %v1195
    %v1198 = vpack.c.bf16 %v1196, %v1196
    %v1199 = vld [vmem:[%s4 + $0x60] sm:$0xf]
    %v1200 = vld [vmem:[%s4 + $0x64] sm:$0xf]
    %v1201 = vld [vmem:[%s4 + $0x68] sm:$0xf]
    %v1202 = vld [vmem:[%s4 + $0x6c] sm:$0xf]
    %v1205 = vunpack.c.l.b16 %v1197
    %v1206 = vunpack.c.l.b16 %v1198
    %v1207 = vrot.slane %v1205, 6
    %v1208 = vrot.slane %v1206, 5
    %v1209 = vsel %vm244, %v1208, %v1207
    %v1210 = vpack.c.b16 %v1209, %v1209
    %1211 = vrot.lane.b32.xlu0 %v1210, 32
    %v1212 = vpop.permute.xlu0 %1211
    %v1217 = vunpack.c.l.b16 %v1199
    %v1218 = vunpack.c.l.b16 %v1200
    %v1219 = vunpack.c.l.b16 %v1201
    %v1220 = vunpack.c.l.b16 %v1202
    %v1221 = vpack.c.b16 %v1218, %v1217
    %v1222 = vpack.c.b16 %v1220, %v1219
    %v1226 = vsel %vm132, %v1212, 0
    %1228 = vmatpush.bf16.msra.mxu0 0
    %1229 = vmatpush.bf16.msra.mxu0 0
    %1230 = vmatpush.bf16.msra.mxu0 0
    %1231 = vmatpush.bf16.msra.mxu0 0
    %1232 = vmatpush.bf16.msra.mxu0 0
    %1233 = vmatpush.bf16.msra.mxu0 0
    %1234 = vmatpush.bf16.msra.mxu0 %v1222
    %1235 = vmatpush.bf16.msra.mxu0 %v1221
    %1236 = vmatmul.bf16.gmra.mxu0 %v1226
    %v1237 = vpop.f32.mrf.mxu0
    %v1238 = vadd.f32 0.0, %v1237
    %v1239 = vpop.f32.mrf.mxu0
    %1240 = vdwg.mxu0
    %v1241 = vadd.f32 %v1079, %v1238
    %v1242 = vpack.c.bf16 %v1193, %v1193
    %v1243 = vpack.c.bf16 %v1194, %v1194
    %v1246 = vunpack.c.l.b16 %v1242
    %v1247 = vunpack.c.l.b16 %v1243
    %v1248 = vrot.slane %v1246, 6
    %v1249 = vrot.slane %v1247, 5
    %v1250 = vsel %vm244, %v1249, %v1248
    %v1251 = vpack.c.b16 %v1250, %v1250
    %1252 = vrot.lane.b32.xlu0 %v1251, 32
    %v1253 = vpop.permute.xlu0 %1252
    %v1255 = vsel %vm132, %v1253, 0
    %1257 = vmatpush.bf16.msra.mxu0 0
    %1258 = vmatpush.bf16.msra.mxu0 0
    %1259 = vmatpush.bf16.msra.mxu0 0
    %1260 = vmatpush.bf16.msra.mxu0 0
    %1261 = vmatpush.bf16.msra.mxu0 0
    %1262 = vmatpush.bf16.msra.mxu0 0
    %1263 = vmatpush.bf16.msra.mxu0 %v129
    %1264 = vmatpush.bf16.msra.mxu0 %v128
    %1265 = vmatmul.bf16.gmra.mxu0 %v1255
    %v1266 = vpop.f32.mrf.mxu0
    %v1267 = vadd.f32 0.0, %v1266
    %v1268 = vpop.f32.mrf.mxu0
    %1269 = vdwg.mxu0
    %v1271 = vrot.slane %v1267, 1
    %v1272 = vrot.slane %v1267, 2
    %v1275 = vadd.f32 %v112, %v1271
    %v1276 = vadd.f32 %v114, %v1272
    %v1277 = vxor.u32 %v1275, 2147483648
    %v1278 = vxor.u32 %v1276, 2147483648
    %v1279 = vmul.f32 %v1277, 1.442695
    %v1280 = vpow.pop %v1279
    %v1281 = vmul.f32 %v1278, 1.442695
    %v1282 = vpow.pop %v1281
    %v1283 = vadd.f32 %v1280, 1.0
    %v1284 = vadd.f32 %v1282, 1.0
    %v1285 = vrcp.pop %v1283
    %v1286 = vmul.f32 %v1283, %v1285
    %v1287 = vsub.f32 1.0, %v1286
    %v1288 = vmul.f32 %v1285, %v1287
    %v1289 = vadd.f32 %v1285, %v1288
    %vm1290 = vweird.f32 %v1283
    %vm1291 = vweird.f32 %v1285
    %vm1292 = vmor %vm1290, %vm1291
    %v1293 = vsel %vm1292, %v1285, %v1289
    %v1294 = vand.u32 2147483647, %v1283
    %vm1295 = vcmp.eq.f32.partialorder %v1294, 8.507059e+37
    %v1296 = vand.u32 %v1283, 2147483648
    %v1297 = vor.u32 1.1754944e-38, %v1296
    %v1298 = vsel %vm1295, %v1297, %v1293
    %v1299 = vmul.f32 1.0, %v1298
    %v1300 = vrcp.pop %v1284
    %v1301 = vmul.f32 %v1284, %v1300
    %v1302 = vsub.f32 1.0, %v1301
    %v1303 = vmul.f32 %v1300, %v1302
    %v1304 = vadd.f32 %v1300, %v1303
    %vm1305 = vweird.f32 %v1284
    %vm1306 = vweird.f32 %v1300
    %vm1307 = vmor %vm1305, %vm1306
    %v1308 = vsel %vm1307, %v1300, %v1304
    %v1309 = vand.u32 2147483647, %v1284
    %vm1310 = vcmp.eq.f32.partialorder %v1309, 8.507059e+37
    %v1311 = vand.u32 %v1284, 2147483648
    %v1312 = vor.u32 1.1754944e-38, %v1311
    %v1313 = vsel %vm1310, %v1312, %v1308
    %v1314 = vmul.f32 1.0, %v1313
    %v1315 = vtanh.pop %v1275
    %v1316 = vtanh.pop %v1276
    %v1319 = vrot.slane %v1181, 7
    %v1320 = vrot.slane %v1182, 7
    %v1323 = vmul.f32 %v1299, %v1319
    %v1324 = vmul.f32 %v1314, %v1320
    %1327 = vrot.lane.b32.xlu0 %v1315, 64
    %v1328 = vpop.permute.xlu0 %1327
    %1329 = vrot.lane.b32.xlu0 %v1316, 64
    %v1330 = vpop.permute.xlu0 %1329
    %v1333 = vmul.f32 %v1299, %v1328
    %v1334 = vmul.f32 %v1314, %v1330
    %1337 = vrot.lane.b32.xlu0 %v1333, 32
    %v1338 = vpop.permute.xlu0 %1337
    %1339 = vrot.lane.b32.xlu0 %v1334, 32
    %v1340 = vpop.permute.xlu0 %1339
    %v1343 = vadd.f32 %v1323, %v1338
    %v1344 = vadd.f32 %v1324, %v1340
    %v1345 = vtanh.pop %v1343
    %v1346 = vtanh.pop %v1344
    %1349 = vrot.lane.b32.xlu0 %v1345, 64
    %v1350 = vpop.permute.xlu0 %1349
    %1351 = vrot.lane.b32.xlu0 %v1346, 64
    %v1352 = vpop.permute.xlu0 %1351
    %v1355 = vmul.f32 %v1299, %v1350
    %v1356 = vmul.f32 %v1314, %v1352
    %v1357 = vtanh.pop %v1355
    %v1358 = vtanh.pop %v1356
    %v1359 = vpack.c.bf16 %v1357, %v1357
    %v1360 = vpack.c.bf16 %v1358, %v1358
    %v1361 = vld [vmem:[%s4 + $0x70] sm:$0xf]
    %v1362 = vld [vmem:[%s4 + $0x74] sm:$0xf]
    %v1363 = vld [vmem:[%s4 + $0x78] sm:$0xf]
    %v1364 = vld [vmem:[%s4 + $0x7c] sm:$0xf]
    %v1367 = vunpack.c.l.b16 %v1359
    %v1368 = vunpack.c.l.b16 %v1360
    %v1369 = vrot.slane %v1367, 7
    %v1370 = vrot.slane %v1368, 6
    %v1371 = vsel %vm244, %v1370, %v1369
    %v1372 = vpack.c.b16 %v1371, %v1371
    %1373 = vrot.lane.b32.xlu0 %v1372, 32
    %v1374 = vpop.permute.xlu0 %1373
    %v1379 = vunpack.c.l.b16 %v1361
    %v1380 = vunpack.c.l.b16 %v1362
    %v1381 = vunpack.c.l.b16 %v1363
    %v1382 = vunpack.c.l.b16 %v1364
    %v1383 = vpack.c.b16 %v1380, %v1379
    %v1384 = vpack.c.b16 %v1382, %v1381
    %v1388 = vsel %vm132, %v1374, 0
    %1390 = vmatpush.bf16.msra.mxu0 0
    %1391 = vmatpush.bf16.msra.mxu0 0
    %1392 = vmatpush.bf16.msra.mxu0 0
    %1393 = vmatpush.bf16.msra.mxu0 0
    %1394 = vmatpush.bf16.msra.mxu0 0
    %1395 = vmatpush.bf16.msra.mxu0 0
    %1396 = vmatpush.bf16.msra.mxu0 %v1384
    %1397 = vmatpush.bf16.msra.mxu0 %v1383
    %1398 = vmatmul.bf16.gmra.mxu0 %v1388
    %v1399 = vpop.f32.mrf.mxu0
    %v1400 = vadd.f32 0.0, %v1399
    %v1401 = vpop.f32.mrf.mxu0
    %1402 = vdwg.mxu0
    %v1403 = vadd.f32 %v1241, %v1400
    %v1404 = vld [vmem:[%s5] sm:$0x1]
    %v1406 = vperm.slane %v1404, 0
    %v1408 = vadd.f32 %v1403, %v1406
    %v1409 = vld [vmem:[%s6] sm:$0xff]
    %v1410 = vld [vmem:[%s6 + $0x8] sm:$0xff]
    %v1411 = vld [vmem:[%s6 + $0x10] sm:$0xff]
    %v1412 = vld [vmem:[%s6 + $0x18] sm:$0xff]
    %v1413 = vld [vmem:[%s7] sm:$0x1]
    %v1415 = vperm.slane %v1413, 0
    %v1418 = vsel %vm132, %v1408, 0
    %1420 = vmatpush.msra.mxu0 0.0
    %1421 = vmatpush.msra.mxu0 0.0
    %1422 = vmatpush.msra.mxu0 0.0
    %1423 = vmatpush.msra.mxu0 0.0
    %1424 = vmatpush.msra.mxu0 0.0
    %1425 = vmatpush.msra.mxu0 0.0
    %1426 = vmatpush.msra.mxu0 0.0
    %1427 = vmatpush.msra.mxu0 0.0
    %1428 = vmatpush.msra.mxu0 0.0
    %1429 = vmatpush.msra.mxu0 0.0
    %1430 = vmatpush.msra.mxu0 0.0
    %1431 = vmatpush.msra.mxu0 0.0
    %1432 = vmatpush.msra.mxu0 %v1412
    %1433 = vmatpush.msra.mxu0 %v1411
    %1434 = vmatpush.msra.mxu0 %v1410
    %1435 = vmatpush.msra.mxu0 %v1409
    %1436 = vmatmul.f32.gmra.mxu0 %v1418
    %v1437 = vpop.f32.mrf.mxu0
    %v1438 = vadd.f32 %v1415, %v1437
    %1439 = vdwg.mxu0
    %vm1440 = vcmask 9216
    %v1441 = vsel %vm1440, %v1438, -inf
    %1442 = vmax.xlane.f32.xlu0 %v1441
    %v1443 = vpop.xlane.xlu0 %1442
    %v1444 = vsub.f32 %v1438, %v1443
    %v1445 = vmul.f32 %v1444, 1.442695
    %v1446 = vpow.pop %v1445
    %v1447 = vsel %vm1440, %v1446, 0.0
    %1448 = vadd.xlane.f32.xlu0 %v1447
    %v1449 = vpop.xlane.xlu0 %1448
    %v1450 = vlog2.pop %v1449
    %v1451 = vmul.f32 %v1450, 0.6931472
    %v1452 = vadd.f32 %v1443, %v1451
    %v1453 = vsub.f32 %v1438, %v1452
    %1454 = vst.msk [vmem:[#allocation2] sm:$0x3] %vm1440, %v1453
    // Predicated region
    $region34: #{bert_classifier_forward.1} parent=1 // pred_check
      _
    $region35: #{bert_classifier_forward.1} parent=1 // pred_check_branch
      %1456 = sbr.rel (0) target = $region37
    $region36: #{bert_classifier_forward.1} parent=1 // pred_region
      %1458 = vsyncadd [#allocation3], 0
      %s1460 = sshll.u32 [#allocation2], 4
      %s1461 = int_to_ptr.vmem [resolvable:$true] %s1460
      %s1462 = sshll.u32 %s8, 4
      %s1463 = int_to_ptr.hbm [resolvable:$true] %s1462
      %1465 = dma.vmem_to_hbm [thread:$0]  %s1461, 32, %s1463, [#allocation3]
    $region37: #{bert_classifier_forward.1} parent=1 // pred_fallthru
      _
    // Predicated region
    $region38: #{bert_classifier_forward.1} parent=1 // pred_check
      _
    $region39: #{bert_classifier_forward.1} parent=1 // pred_check_branch
      %1467 = sbr.rel (0) target = $region41
    $region40: #{bert_classifier_forward.1} parent=1 // pred_region
      %1469 = dma.done [#allocation3], 32
    $region41: #{bert_classifier_forward.1} parent=1 // pred_fallthru
      _
    %1470 = vsyncpa [#allocation3], 1

</llo_original>
